<compile_context>
chip_gen: v6e
topology: v6e:2x2x1
jax: 0.10.0
libtpu: 0.0.40
codegen_flags: <defaults>
</compile_context>

<pallas_src>
import functools

import jax
import jax.numpy as jnp
from jax import lax
from jax.experimental import pallas as pl
from jax.experimental.pallas import tpu as pltpu


def _round_up(x, m):
    return (x + m - 1) // m * m


# --------------------------------------------------------------------------
# Kernel
# --------------------------------------------------------------------------
def _gram_kernel(f_lhs_ref, f_rhs_ref, *rest, inv_div, compute_loss):
    if compute_loss:
        t_ref, g_ref, loss_ref = rest
    else:
        (g_ref,) = rest

    k = pl.program_id(1)

    @pl.when(k == 0)
    def _init():
        g_ref[...] = jnp.zeros_like(g_ref)

    # (TM, TK) x (M_pad, TK) contracted on axis 1 -> (TM, M_pad).
    # No explicit transpose => no XLU relayout / extra VMEM copy of F.
    g_ref[...] += lax.dot_general(
        f_lhs_ref[...],
        f_rhs_ref[...],
        dimension_numbers=(((1,), (1,)), ((), ())),
        preferred_element_type=jnp.float32,
        precision=lax.Precision.HIGHEST,
    )

    @pl.when(k == pl.num_programs(1) - 1)
    def _finalize():
        g = g_ref[...] * inv_div
        g_ref[...] = g
        if compute_loss:
            d = g - t_ref[...]
            # Lane-dense partial sum-of-squares for this gram row block.
            loss_ref[0] = jnp.sum(d * d, axis=0, keepdims=True)


# --------------------------------------------------------------------------
# pallas_call wrapper
# --------------------------------------------------------------------------
def _gram_pallas(features_padded, inv_div, tm, tk, target_padded=None,
                 compute_dtype=jnp.float32,
                 vmem_limit_bytes=32 * 1024 * 1024):
    m_pad, k_pad = features_padded.shape
    num_m = m_pad // tm
    num_k = k_pad // tk
    compute_loss = target_padded is not None

    f = features_padded.astype(compute_dtype)

    kernel = functools.partial(
        _gram_kernel, inv_div=inv_div, compute_loss=compute_loss)

    in_specs = [
        pl.BlockSpec((tm, tk), lambda i, kk: (i, kk)),     # F row tile (LHS)
        pl.BlockSpec((m_pad, tk), lambda i, kk: (0, kk)),  # F all rows (RHS)
    ]
    inputs = [f, f]
    out_shapes = [jax.ShapeDtypeStruct((m_pad, m_pad), jnp.float32)]
    out_specs = [pl.BlockSpec((tm, m_pad), lambda i, kk: (i, 0))]
    if compute_loss:
        # Target gram row block: constant index along K -> DMA'd once per i.
        in_specs.append(pl.BlockSpec((tm, m_pad), lambda i, kk: (i, 0)))
        inputs.append(target_padded.astype(jnp.float32))
        # Lane-dense MSE partial sums, one row per gram row block.
        out_shapes.append(jax.ShapeDtypeStruct((num_m, 1, m_pad), jnp.float32))
        out_specs.append(pl.BlockSpec((1, 1, m_pad), lambda i, kk: (i, 0, 0)))

    results = pl.pallas_call(
        kernel,
        out_shape=tuple(out_shapes),
        grid=(num_m, num_k),
        in_specs=in_specs,
        out_specs=tuple(out_specs),
        compiler_params=pltpu.CompilerParams(
            dimension_semantics=("parallel", "arbitrary"),
            vmem_limit_bytes=vmem_limit_bytes,
        ),
    )(*inputs)

    if compute_loss:
        return results[0], results[1]
    return results[0], None


# --------------------------------------------------------------------------
# Tiling / padding decisions (wrapper-side layout plumbing only)
# --------------------------------------------------------------------------
def _choose_k_tiling(k):
    k_min = _round_up(k, 128)
    if k_min <= 2048:
        return k_min, k_min                     # single K block
    budget = k_min + k_min // 8                 # allow <=12.5% extra zero-pad
    for cand in (2048, 1024, 512, 256, 128):
        k_pad = _round_up(k, cand)
        if k_pad <= budget:
            return cand, k_pad
    return 128, k_min


def _prepare(x):
    b, c, h, w = x.shape
    m = b * h
    k = w * c
    features = jnp.reshape(x, (m, k)).astype(jnp.float32)  # == torch .view

    m_pad = _round_up(m, 128)
    tm = 256 if (m_pad % 256 == 0) else 128

    tk, k_pad = _choose_k_tiling(k)
    # Keep the streamed (M_pad, TK) RHS block (double-buffered) within ~16 MiB.
    while tk > 128 and 2 * m_pad * tk * 4 > 16 * 1024 * 1024:
        tk //= 2
        k_pad = _round_up(k, tk)

    features_padded = jnp.pad(features, ((0, m_pad - m), (0, k_pad - k)))
    inv_div = 1.0 / float(m * k)                # = 1 / (B*H*W*C)
    return features_padded, m, k, m_pad, k_pad, tm, tk, inv_div


# --------------------------------------------------------------------------
# Public API mirroring the PyTorch module
# --------------------------------------------------------------------------
def gram_matrix(x, compute_dtype=jnp.float32):
    """JAX/Pallas equivalent of the PyTorch gram_matrix() (gram-only path)."""
    fp, m, _, _, _, tm, tk, inv_div = _prepare(x)
    g_pad, _ = _gram_pallas(fp, inv_div, tm, tk, compute_dtype=compute_dtype)
    return g_pad[:m, :m]


class StyleLoss:
    """Mirrors PyTorch StyleLoss: forward returns input, stores self.loss."""

    def __init__(self, target_feature, compute_dtype=jnp.float32):
        self._compute_dtype = compute_dtype
        fp, m, _, m_pad, _, tm, tk, inv_div = _prepare(target_feature)
        # Gram-only kernel variant: no zero-target DMA, no wasted MSE work.
        g_pad, _ = _gram_pallas(fp, inv_div, tm, tk,
                                compute_dtype=compute_dtype)
        self._target_padded = g_pad          # (m_pad, m_pad); pad region is 0
        self._m = m
        self.target = g_pad[:m, :m]
        self.loss = jnp.float32(0.0)         # mse(target, target) == 0

    def __call__(self, x):
        fp, m, _, m_pad, _, tm, tk, inv_div = _prepare(x)
        assert self._target_padded.shape == (m_pad, m_pad), (
            "input feature-map shape incompatible with stored target gram")
        _, partial = _gram_pallas(fp, inv_div, tm, tk,
                                  target_padded=self._target_padded,
                                  compute_dtype=self._compute_dtype)
        # Padded rows/cols of both grams are exactly zero, so the sum of
        # squared diffs over the padded array equals the unpadded sum;
        # divide by the *unpadded* element count for the mean.
        self.loss = jnp.sum(partial) / jnp.float32(m * m)
        return x  # forward returns its input unchanged


# --------------------------------------------------------------------------
# Demo / correctness check
# --------------------------------------------------------------------------
if __name__ == "__main__":
    key = jax.random.PRNGKey(0)
    k_tgt, k_in, k_tgt2, k_in2 = jax.random.split(key, 4)

    def ref_gram(a):
        b, c, h, w = a.shape
        f = jnp.reshape(a, (b * h, w * c)).astype(jnp.float32)
        g = jnp.einsum("ik,jk->ij", f, f, precision=lax.Precision.HIGHEST)
        return g / (b * h * w * c)

    # ---- primary small test (single-tile path) ---------------------------
    B, C, H, W = 2, 4, 16, 16
    target_feature = jax.random.normal(k_tgt, (B, C, H, W), dtype=jnp.float32)
    x = jax.random.normal(k_in, (B, C, H, W), dtype=jnp.float32)

    module = StyleLoss(target_feature)
    out = module(x)
    jax.block_until_ready((out, module.loss, module.target))

    g_t = ref_gram(target_feature)
    g_x = ref_gram(x)
    loss_ref = jnp.mean((g_x - g_t) ** 2)

    assert module.target.shape == g_t.shape
    assert jnp.allclose(module.target, g_t, atol=1e-5, rtol=1e-5)
    assert jnp.allclose(module.loss, loss_ref, atol=1e-5, rtol=1e-5)
    assert jnp.array_equal(out, x)

    # ---- secondary test exercising the tiled path (num_m=2, num_k>1) -----
    B2, C2, H2, W2 = 2, 60, 200, 36          # M = 400, K = 2160
    tf2 = jax.random.normal(k_tgt2, (B2, C2, H2, W2), dtype=jnp.float32)
    x2 = jax.random.normal(k_in2, (B2, C2, H2, W2), dtype=jnp.float32)

    mod2 = StyleLoss(tf2)
    out2 = mod2(x2)
    jax.block_until_ready((out2, mod2.loss))

    g_t2 = ref_gram(tf2)
    g_x2 = ref_gram(x2)
    loss_ref2 = jnp.mean((g_x2 - g_t2) ** 2)

    assert jnp.allclose(mod2.target, g_t2, atol=1e-5, rtol=1e-4)
    assert jnp.allclose(mod2.loss, loss_ref2, atol=1e-6, rtol=1e-4)
    assert jnp.array_equal(out2, x2)

    print("KERNEL_OK")
</pallas_src>

<mosaic_0001>
module attributes {stable_mosaic.version = 11 : i64} {
  func.func @_gram_kernel(%arg0: i32, %arg1: i32, %arg2: memref<128x128xf32, #tpu.memory_space<vmem>>, %arg3: memref<128x128xf32, #tpu.memory_space<vmem>>, %arg4: memref<128x128xf32, #tpu.memory_space<vmem>>) attributes {dimension_semantics = [#tpu.dimension_semantics<parallel>, #tpu.dimension_semantics<arbitrary>], iteration_bounds = array<i64: 1, 1>, scalar_prefetch = 0 : i64, scratch_operands = 0 : i64, tpu.core_type = #tpu.core_type<tc>, window_params = [{transform_indices = @transform_0, window_bounds = array<i64: 128, 128>}, {transform_indices = @transform_1, window_bounds = array<i64: 128, 128>}, {transform_indices = @transform_2, window_bounds = array<i64: 128, 128>}]} {
    %c0_i32 = arith.constant 0 : i32
    %0 = arith.cmpi eq, %arg1, %c0_i32 : i32
    %1 = arith.extui %0 : i1 to i32
    %c0_i32_0 = arith.constant 0 : i32
    %2 = arith.cmpi ne, %1, %c0_i32_0 : i32
    scf.if %2 {
      %cst_10 = arith.constant 0.000000e+00 : f32
      %12 = vector.broadcast %cst_10 : f32 to vector<128x128xf32>
      %c0_11 = arith.constant 0 : index
      %c0_12 = arith.constant 0 : index
      %13 = vector.load %arg4[%c0_11, %c0_12] : memref<128x128xf32, #tpu.memory_space<vmem>>, vector<128x128xf32>
      tpu.vector_store %arg4[%c0_11, %c0_12], %12 {strides = array<i32>} : memref<128x128xf32, #tpu.memory_space<vmem>>, vector<128x128xf32>,
    } else {
    }
    %c0 = arith.constant 0 : index
    %c0_1 = arith.constant 0 : index
    %3 = vector.load %arg4[%c0, %c0_1] : memref<128x128xf32, #tpu.memory_space<vmem>>, vector<128x128xf32>
    %c0_2 = arith.constant 0 : index
    %c0_3 = arith.constant 0 : index
    %4 = vector.load %arg2[%c0_2, %c0_3] : memref<128x128xf32, #tpu.memory_space<vmem>>, vector<128x128xf32>
    %c0_4 = arith.constant 0 : index
    %c0_5 = arith.constant 0 : index
    %5 = vector.load %arg3[%c0_4, %c0_5] : memref<128x128xf32, #tpu.memory_space<vmem>>, vector<128x128xf32>
    %cst = arith.constant dense<0.000000e+00> : vector<128x128xf32>
    %6 = tpu.matmul %4, %5, %cst {dimension_numbers = #tpu.dot_dimension_numbers<[1], [1], [0], [0], [0, 0, 1, 0], [], []>, precision = #tpu.contract_precision<fp32>} : vector<128x128xf32>, vector<128x128xf32>, vector<128x128xf32> -> vector<128x128xf32>
    %7 = arith.addf %3, %6 : vector<128x128xf32>
    %c0_6 = arith.constant 0 : index
    %c0_7 = arith.constant 0 : index
    %8 = vector.load %arg4[%c0_6, %c0_7] : memref<128x128xf32, #tpu.memory_space<vmem>>, vector<128x128xf32>
    tpu.vector_store %arg4[%c0_6, %c0_7], %7 {strides = array<i32>} : memref<128x128xf32, #tpu.memory_space<vmem>>, vector<128x128xf32>,
    %c0_i32_8 = arith.constant 0 : i32
    %9 = arith.cmpi eq, %arg1, %c0_i32_8 : i32
    %10 = arith.extui %9 : i1 to i32
    %c0_i32_9 = arith.constant 0 : i32
    %11 = arith.cmpi ne, %10, %c0_i32_9 : i32
    scf.if %11 {
      %c0_10 = arith.constant 0 : index
      %c0_11 = arith.constant 0 : index
      %12 = vector.load %arg4[%c0_10, %c0_11] : memref<128x128xf32, #tpu.memory_space<vmem>>, vector<128x128xf32>
      %cst_12 = arith.constant 4.8828125E-4 : f32
      %13 = vector.broadcast %cst_12 : f32 to vector<128x128xf32>
      %14 = arith.mulf %12, %13 : vector<128x128xf32>
      %c0_13 = arith.constant 0 : index
      %c0_14 = arith.constant 0 : index
      %15 = vector.load %arg4[%c0_13, %c0_14] : memref<128x128xf32, #tpu.memory_space<vmem>>, vector<128x128xf32>
      tpu.vector_store %arg4[%c0_13, %c0_14], %14 {strides = array<i32>} : memref<128x128xf32, #tpu.memory_space<vmem>>, vector<128x128xf32>,
    } else {
    }
    return
  }
  func.func @transform_0(%arg0: i32, %arg1: i32) -> (i32, i32) {
    %c0_i32 = arith.constant 0 : i32
    return %arg0, %arg1 : i32, i32
  }
  func.func @transform_1(%arg0: i32, %arg1: i32) -> (i32, i32) {
    %c0_i32 = arith.constant 0 : i32
    %c0_i32_0 = arith.constant 0 : i32
    return %c0_i32, %arg1 : i32, i32
  }
  func.func @transform_2(%arg0: i32, %arg1: i32) -> (i32, i32) {
    %c0_i32 = arith.constant 0 : i32
    %c0_i32_0 = arith.constant 0 : i32
    return %arg0, %c0_i32 : i32, i32
  }
}

</mosaic_0001>

<llo_original>
// kernel: tpu_custom_call.1
$region0: #{tpu_custom_call.1}
  #allocation0 [shape = 'u32[]', space=smem, size = 0x4, offset = 0x4, fixed_abs, tag = 'smem constant byte address 0x4 - core index']
  #allocation1 [shape = 'u32[144,128]{1,0:T(1,128)}', space=vmem, size = 0x12000, scoped, tag = 'internal scratch']
  %s0 = inlined_call_operand.hbm [shape: f32[128,128], index: 0, kind: input, shape index: {}]
  %s1 = inlined_call_operand.hbm [shape: f32[128,128], index: 1, kind: input, shape index: {}]
  %s2 = inlined_call_operand.hbm [shape: f32[128,128], index: 2, kind: output, shape index: {}]
  %s3 = sld [smem:[#allocation0]]
  $region34: #{tpu_custom_call.1} parent=0
    _
  %s5 = ssub.s32 1, %s3
  %s6 = scalar_select 0, %s5, %s3
  $region1: #{tpu_custom_call.1} parent=0
    #allocation2 [shape = 'u8[65536]{0}', space=vmem, size = 0x10000, scoped, tag = 'input window, operand 0, single buffered']
    #allocation3 [shape = 's32[1]{0}', space=sflag, size = 0x4, scoped, tag = 'scoped memory for tpu_custom_call.1']
    #allocation4 [shape = 's32[1]{0}', space=sflag, size = 0x4, scoped, tag = 'scoped memory for tpu_custom_call.1']
    #allocation5 [shape = 'u8[65536]{0}', space=vmem, size = 0x10000, scoped, tag = 'input window, operand 1, single buffered']
    #allocation6 [shape = 's32[1]{0}', space=sflag, size = 0x4, scoped, tag = 'scoped memory for tpu_custom_call.1']
    #allocation7 [shape = 'u8[65536]{0}', space=vmem, size = 0x10000, scoped, tag = 'output window, operand 0, single buffered']
    %7 = vsyncpa [#allocation3], 0
    %8 = vsyncpa [#allocation6], 0
    %9 = vsyncpa [#allocation4], 0
    // Predicated region
    $region2: #{tpu_custom_call.1} parent=1 // pred_check
      _
    $region3: #{tpu_custom_call.1} parent=1 // pred_check_branch
      %11 = sbr.rel (0) target = $region5
    $region4: #{tpu_custom_call.1} parent=1 // pred_region
      %s13 = ssub.s32 2048, 2048
      %14 = vsyncadd [#allocation3], %s13
      %s15 = sshll.u32 [#allocation2], 4
      %s16 = int_to_ptr.vmem [resolvable:$true] %s15
      %21 = dma.hbm_to_vmem [thread:$0]  %s0, 2048, %s16, [#allocation3], 128, 128, 8
    $region5: #{tpu_custom_call.1} parent=1 // pred_fallthru
      _
    // Predicated region
    $region6: #{tpu_custom_call.1} parent=1 // pred_check
      _
    $region7: #{tpu_custom_call.1} parent=1 // pred_check_branch
      %23 = sbr.rel (0) target = $region9
    $region8: #{tpu_custom_call.1} parent=1 // pred_region
      %s25 = ssub.s32 2048, 2048
      %26 = vsyncadd [#allocation6], %s25
      %s27 = sshll.u32 [#allocation5], 4
      %s28 = int_to_ptr.vmem [resolvable:$true] %s27
      %33 = dma.hbm_to_vmem [thread:$0]  %s1, 2048, %s28, [#allocation6], 128, 128, 8
    $region9: #{tpu_custom_call.1} parent=1 // pred_fallthru
      _
    // Predicated region
    $region10: #{tpu_custom_call.1} parent=1 // pred_check
      _
    $region11: #{tpu_custom_call.1} parent=1 // pred_check_branch
      %35 = sbr.rel (0) target = $region13
    $region12: #{tpu_custom_call.1} parent=1 // pred_region
      %36 = dma.done [#allocation3], 2048
    $region13: #{tpu_custom_call.1} parent=1 // pred_fallthru
      _
    // Predicated region
    $region14: #{tpu_custom_call.1} parent=1 // pred_check
      _
    $region15: #{tpu_custom_call.1} parent=1 // pred_check_branch
      %38 = sbr.rel (0) target = $region17
    $region16: #{tpu_custom_call.1} parent=1 // pred_region
      %39 = dma.done [#allocation6], 2048
    $region17: #{tpu_custom_call.1} parent=1 // pred_fallthru
      _
    %p40 = scmp.eq.s32.totalorder 0, 0
    // Predicated region
    $region18: #{tpu_custom_call.1} parent=1 // pred_check
      %p41 = pneg %p40
    $region19: #{tpu_custom_call.1} parent=1 // pred_check_branch
      %43 = sbr.rel (%p41) target = $region21
    $region20: #{tpu_custom_call.1} parent=1 // pred_region
      %44 = vst [vmem:[#allocation7] sm:$0xff] 0.0
      %45 = vst [vmem:[#allocation7 + $0x8] sm:$0xff] 0.0
      %46 = vst [vmem:[#allocation7 + $0x10] sm:$0xff] 0.0
      %47 = vst [vmem:[#allocation7 + $0x18] sm:$0xff] 0.0
      %48 = vst [vmem:[#allocation7 + $0x20] sm:$0xff] 0.0
      %49 = vst [vmem:[#allocation7 + $0x28] sm:$0xff] 0.0
      %50 = vst [vmem:[#allocation7 + $0x30] sm:$0xff] 0.0
      %51 = vst [vmem:[#allocation7 + $0x38] sm:$0xff] 0.0
      %52 = vst [vmem:[#allocation7 + $0x40] sm:$0xff] 0.0
      %53 = vst [vmem:[#allocation7 + $0x48] sm:$0xff] 0.0
      %54 = vst [vmem:[#allocation7 + $0x50] sm:$0xff] 0.0
      %55 = vst [vmem:[#allocation7 + $0x58] sm:$0xff] 0.0
      %56 = vst [vmem:[#allocation7 + $0x60] sm:$0xff] 0.0
      %57 = vst [vmem:[#allocation7 + $0x68] sm:$0xff] 0.0
      %58 = vst [vmem:[#allocation7 + $0x70] sm:$0xff] 0.0
      %59 = vst [vmem:[#allocation7 + $0x78] sm:$0xff] 0.0
    $region21: #{tpu_custom_call.1} parent=1 // pred_fallthru
      _
    %v60 = vld [vmem:[#allocation7] sm:$0xff]
    %v61 = vld [vmem:[#allocation7 + $0x8] sm:$0xff]
    %v62 = vld [vmem:[#allocation7 + $0x10] sm:$0xff]
    %v63 = vld [vmem:[#allocation7 + $0x18] sm:$0xff]
    %v64 = vld [vmem:[#allocation7 + $0x20] sm:$0xff]
    %v65 = vld [vmem:[#allocation7 + $0x28] sm:$0xff]
    %v66 = vld [vmem:[#allocation7 + $0x30] sm:$0xff]
    %v67 = vld [vmem:[#allocation7 + $0x38] sm:$0xff]
    %v68 = vld [vmem:[#allocation7 + $0x40] sm:$0xff]
    %v69 = vld [vmem:[#allocation7 + $0x48] sm:$0xff]
    %v70 = vld [vmem:[#allocation7 + $0x50] sm:$0xff]
    %v71 = vld [vmem:[#allocation7 + $0x58] sm:$0xff]
    %v72 = vld [vmem:[#allocation7 + $0x60] sm:$0xff]
    %v73 = vld [vmem:[#allocation7 + $0x68] sm:$0xff]
    %v74 = vld [vmem:[#allocation7 + $0x70] sm:$0xff]
    %v75 = vld [vmem:[#allocation7 + $0x78] sm:$0xff]
    %v76 = vld [vmem:[#allocation2] sm:$0xff]
    %v77 = vld [vmem:[#allocation2 + $0x8] sm:$0xff]
    %v78 = vld [vmem:[#allocation2 + $0x10] sm:$0xff]
    %v79 = vld [vmem:[#allocation2 + $0x18] sm:$0xff]
    %v80 = vld [vmem:[#allocation2 + $0x20] sm:$0xff]
    %v81 = vld [vmem:[#allocation2 + $0x28] sm:$0xff]
    %v82 = vld [vmem:[#allocation2 + $0x30] sm:$0xff]
    %v83 = vld [vmem:[#allocation2 + $0x38] sm:$0xff]
    %v84 = vld [vmem:[#allocation2 + $0x40] sm:$0xff]
    %v85 = vld [vmem:[#allocation2 + $0x48] sm:$0xff]
    %v86 = vld [vmem:[#allocation2 + $0x50] sm:$0xff]
    %v87 = vld [vmem:[#allocation2 + $0x58] sm:$0xff]
    %v88 = vld [vmem:[#allocation2 + $0x60] sm:$0xff]
    %v89 = vld [vmem:[#allocation2 + $0x68] sm:$0xff]
    %v90 = vld [vmem:[#allocation2 + $0x70] sm:$0xff]
    %v91 = vld [vmem:[#allocation2 + $0x78] sm:$0xff]
    %v92 = vld [vmem:[#allocation5] sm:$0xff]
    %v93 = vld [vmem:[#allocation5 + $0x8] sm:$0xff]
    %v94 = vld [vmem:[#allocation5 + $0x10] sm:$0xff]
    %v95 = vld [vmem:[#allocation5 + $0x18] sm:$0xff]
    %v96 = vld [vmem:[#allocation5 + $0x20] sm:$0xff]
    %v97 = vld [vmem:[#allocation5 + $0x28] sm:$0xff]
    %v98 = vld [vmem:[#allocation5 + $0x30] sm:$0xff]
    %v99 = vld [vmem:[#allocation5 + $0x38] sm:$0xff]
    %v100 = vld [vmem:[#allocation5 + $0x40] sm:$0xff]
    %v101 = vld [vmem:[#allocation5 + $0x48] sm:$0xff]
    %v102 = vld [vmem:[#allocation5 + $0x50] sm:$0xff]
    %v103 = vld [vmem:[#allocation5 + $0x58] sm:$0xff]
    %v104 = vld [vmem:[#allocation5 + $0x60] sm:$0xff]
    %v105 = vld [vmem:[#allocation5 + $0x68] sm:$0xff]
    %v106 = vld [vmem:[#allocation5 + $0x70] sm:$0xff]
    %v107 = vld [vmem:[#allocation5 + $0x78] sm:$0xff]
    %108 = vmatprep.subr.mxu0 0.0
    %v109 = vand.u32 %v107, 4294901760
    %110 = vmatpush1.xpose.msra.mxu0 %v109
    %111 = vmatprep.subr.mxu0 0.0
    %v112 = vand.u32 %v106, 4294901760
    %113 = vmatpush1.xpose.msra.mxu0 %v112
    %114 = vmatprep.subr.mxu0 0.0
    %v115 = vand.u32 %v105, 4294901760
    %116 = vmatpush1.xpose.msra.mxu0 %v115
    %117 = vmatprep.subr.mxu0 0.0
    %v118 = vand.u32 %v104, 4294901760
    %119 = vmatpush1.xpose.msra.mxu0 %v118
    %120 = vmatprep.subr.mxu0 0.0
    %v121 = vand.u32 %v103, 4294901760
    %122 = vmatpush1.xpose.msra.mxu0 %v121
    %123 = vmatprep.subr.mxu0 0.0
    %v124 = vand.u32 %v102, 4294901760
    %125 = vmatpush1.xpose.msra.mxu0 %v124
    %126 = vmatprep.subr.mxu0 0.0
    %v127 = vand.u32 %v101, 4294901760
    %128 = vmatpush1.xpose.msra.mxu0 %v127
    %129 = vmatprep.subr.mxu0 0.0
    %v130 = vand.u32 %v100, 4294901760
    %131 = vmatpush1.xpose.msra.mxu0 %v130
    %132 = vmatprep.subr.mxu0 0.0
    %v133 = vand.u32 %v99, 4294901760
    %134 = vmatpush1.xpose.msra.mxu0 %v133
    %135 = vmatprep.subr.mxu0 0.0
    %v136 = vand.u32 %v98, 4294901760
    %137 = vmatpush1.xpose.msra.mxu0 %v136
    %138 = vmatprep.subr.mxu0 0.0
    %v139 = vand.u32 %v97, 4294901760
    %140 = vmatpush1.xpose.msra.mxu0 %v139
    %141 = vmatprep.subr.mxu0 0.0
    %v142 = vand.u32 %v96, 4294901760
    %143 = vmatpush1.xpose.msra.mxu0 %v142
    %144 = vmatprep.subr.mxu0 0.0
    %v145 = vand.u32 %v95, 4294901760
    %146 = vmatpush1.xpose.msra.mxu0 %v145
    %147 = vmatprep.subr.mxu0 0.0
    %v148 = vand.u32 %v94, 4294901760
    %149 = vmatpush1.xpose.msra.mxu0 %v148
    %150 = vmatprep.subr.mxu0 0.0
    %v151 = vand.u32 %v93, 4294901760
    %152 = vmatpush1.xpose.msra.mxu0 %v151
    %153 = vmatprep.subr.mxu0 0.0
    %v154 = vand.u32 %v92, 4294901760
    %155 = vmatpush1.xpose.msra.mxu0 %v154
    %156 = vmatprep.subr.mxu0 0.0
    %157 = vmatpush2.xpose.msra.mxu0 0.0
    %158 = vmatprep.subr.mxu0 0.0
    %159 = vmatpush2.xpose.msra.mxu0 0.0
    %160 = vmatprep.subr.mxu0 0.0
    %161 = vmatpush2.xpose.msra.mxu0 0.0
    %162 = vmatprep.subr.mxu0 0.0
    %163 = vmatpush2.xpose.msra.mxu0 0.0
    %164 = vmatprep.subr.mxu0 0.0
    %165 = vmatpush2.xpose.msra.mxu0 0.0
    %166 = vmatprep.subr.mxu0 0.0
    %167 = vmatpush2.xpose.msra.mxu0 0.0
    %168 = vmatprep.subr.mxu0 0.0
    %169 = vmatpush2.xpose.msra.mxu0 0.0
    %170 = vmatprep.subr.mxu0 0.0
    %171 = vmatpush2.xpose.msra.mxu0 0.0
    %172 = vmatprep.subr.mxu0 0.0
    %173 = vmatpush2.xpose.msra.mxu0 0.0
    %174 = vmatprep.subr.mxu0 0.0
    %175 = vmatpush2.xpose.msra.mxu0 0.0
    %176 = vmatprep.subr.mxu0 0.0
    %177 = vmatpush2.xpose.msra.mxu0 0.0
    %178 = vmatprep.subr.mxu0 0.0
    %179 = vmatpush2.xpose.msra.mxu0 0.0
    %180 = vmatprep.subr.mxu0 0.0
    %181 = vmatpush2.xpose.msra.mxu0 0.0
    %182 = vmatprep.subr.mxu0 0.0
    %183 = vmatpush2.xpose.msra.mxu0 0.0
    %184 = vmatprep.subr.mxu0 0.0
    %185 = vmatpush2.xpose.msra.mxu0 0.0
    %186 = vmatprep.subr.mxu0 0.0
    %187 = vmatpush2.xpose.msra.mxu0 0.0
    %188 = vmatprep.mubr.f32.mxu0 0.0
    %v189 = vand.u32 %v76, 4294901760
    %v190 = vsub.f32 %v76, %v189
    %v191 = vand.u32 %v190, 4294901760
    %v192 = vsub.f32 %v190, %v191
    %v193 = vand.u32 %v192, 4294901760
    %194 = vmatmul.mubr.f32.gmra.mxu0 %v193
    %v195 = vpop.f32.mrf.mxu0
    %v196 = vadd.f32 0.0, %v195
    %v197 = vpop.f32.mrf.mxu0
    %198 = vmatprep.mubr.f32.mxu0 0.0
    %v199 = vand.u32 %v77, 4294901760
    %v200 = vsub.f32 %v77, %v199
    %v201 = vand.u32 %v200, 4294901760
    %v202 = vsub.f32 %v200, %v201
    %v203 = vand.u32 %v202, 4294901760
    %204 = vmatmul.mubr.f32.gmra.mxu0 %v203
    %v205 = vpop.f32.mrf.mxu0
    %v206 = vadd.f32 0.0, %v205
    %v207 = vpop.f32.mrf.mxu0
    %208 = vmatprep.mubr.f32.mxu0 0.0
    %v209 = vand.u32 %v78, 4294901760
    %v210 = vsub.f32 %v78, %v209
    %v211 = vand.u32 %v210, 4294901760
    %v212 = vsub.f32 %v210, %v211
    %v213 = vand.u32 %v212, 4294901760
    %214 = vmatmul.mubr.f32.gmra.mxu0 %v213
    %v215 = vpop.f32.mrf.mxu0
    %v216 = vadd.f32 0.0, %v215
    %v217 = vpop.f32.mrf.mxu0
    %218 = vmatprep.mubr.f32.mxu0 0.0
    %v219 = vand.u32 %v79, 4294901760
    %v220 = vsub.f32 %v79, %v219
    %v221 = vand.u32 %v220, 4294901760
    %v222 = vsub.f32 %v220, %v221
    %v223 = vand.u32 %v222, 4294901760
    %224 = vmatmul.mubr.f32.gmra.mxu0 %v223
    %v225 = vpop.f32.mrf.mxu0
    %v226 = vadd.f32 0.0, %v225
    %v227 = vpop.f32.mrf.mxu0
    %228 = vmatprep.mubr.f32.mxu0 0.0
    %v229 = vand.u32 %v80, 4294901760
    %v230 = vsub.f32 %v80, %v229
    %v231 = vand.u32 %v230, 4294901760
    %v232 = vsub.f32 %v230, %v231
    %v233 = vand.u32 %v232, 4294901760
    %234 = vmatmul.mubr.f32.gmra.mxu0 %v233
    %v235 = vpop.f32.mrf.mxu0
    %v236 = vadd.f32 0.0, %v235
    %v237 = vpop.f32.mrf.mxu0
    %238 = vmatprep.mubr.f32.mxu0 0.0
    %v239 = vand.u32 %v81, 4294901760
    %v240 = vsub.f32 %v81, %v239
    %v241 = vand.u32 %v240, 4294901760
    %v242 = vsub.f32 %v240, %v241
    %v243 = vand.u32 %v242, 4294901760
    %244 = vmatmul.mubr.f32.gmra.mxu0 %v243
    %v245 = vpop.f32.mrf.mxu0
    %v246 = vadd.f32 0.0, %v245
    %v247 = vpop.f32.mrf.mxu0
    %248 = vmatprep.mubr.f32.mxu0 0.0
    %v249 = vand.u32 %v82, 4294901760
    %v250 = vsub.f32 %v82, %v249
    %v251 = vand.u32 %v250, 4294901760
    %v252 = vsub.f32 %v250, %v251
    %v253 = vand.u32 %v252, 4294901760
    %254 = vmatmul.mubr.f32.gmra.mxu0 %v253
    %v255 = vpop.f32.mrf.mxu0
    %v256 = vadd.f32 0.0, %v255
    %v257 = vpop.f32.mrf.mxu0
    %258 = vmatprep.mubr.f32.mxu0 0.0
    %v259 = vand.u32 %v83, 4294901760
    %v260 = vsub.f32 %v83, %v259
    %v261 = vand.u32 %v260, 4294901760
    %v262 = vsub.f32 %v260, %v261
    %v263 = vand.u32 %v262, 4294901760
    %264 = vmatmul.mubr.f32.gmra.mxu0 %v263
    %v265 = vpop.f32.mrf.mxu0
    %v266 = vadd.f32 0.0, %v265
    %v267 = vpop.f32.mrf.mxu0
    %268 = vmatprep.mubr.f32.mxu0 0.0
    %v269 = vand.u32 %v84, 4294901760
    %v270 = vsub.f32 %v84, %v269
    %v271 = vand.u32 %v270, 4294901760
    %v272 = vsub.f32 %v270, %v271
    %v273 = vand.u32 %v272, 4294901760
    %274 = vmatmul.mubr.f32.gmra.mxu0 %v273
    %v275 = vpop.f32.mrf.mxu0
    %v276 = vadd.f32 0.0, %v275
    %v277 = vpop.f32.mrf.mxu0
    %278 = vmatprep.mubr.f32.mxu0 0.0
    %v279 = vand.u32 %v85, 4294901760
    %v280 = vsub.f32 %v85, %v279
    %v281 = vand.u32 %v280, 4294901760
    %v282 = vsub.f32 %v280, %v281
    %v283 = vand.u32 %v282, 4294901760
    %284 = vmatmul.mubr.f32.gmra.mxu0 %v283
    %v285 = vpop.f32.mrf.mxu0
    %v286 = vadd.f32 0.0, %v285
    %v287 = vpop.f32.mrf.mxu0
    %288 = vmatprep.mubr.f32.mxu0 0.0
    %v289 = vand.u32 %v86, 4294901760
    %v290 = vsub.f32 %v86, %v289
    %v291 = vand.u32 %v290, 4294901760
    %v292 = vsub.f32 %v290, %v291
    %v293 = vand.u32 %v292, 4294901760
    %294 = vmatmul.mubr.f32.gmra.mxu0 %v293
    %v295 = vpop.f32.mrf.mxu0
    %v296 = vadd.f32 0.0, %v295
    %v297 = vpop.f32.mrf.mxu0
    %298 = vmatprep.mubr.f32.mxu0 0.0
    %v299 = vand.u32 %v87, 4294901760
    %v300 = vsub.f32 %v87, %v299
    %v301 = vand.u32 %v300, 4294901760
    %v302 = vsub.f32 %v300, %v301
    %v303 = vand.u32 %v302, 4294901760
    %304 = vmatmul.mubr.f32.gmra.mxu0 %v303
    %v305 = vpop.f32.mrf.mxu0
    %v306 = vadd.f32 0.0, %v305
    %v307 = vpop.f32.mrf.mxu0
    %308 = vmatprep.mubr.f32.mxu0 0.0
    %v309 = vand.u32 %v88, 4294901760
    %v310 = vsub.f32 %v88, %v309
    %v311 = vand.u32 %v310, 4294901760
    %v312 = vsub.f32 %v310, %v311
    %v313 = vand.u32 %v312, 4294901760
    %314 = vmatmul.mubr.f32.gmra.mxu0 %v313
    %v315 = vpop.f32.mrf.mxu0
    %v316 = vadd.f32 0.0, %v315
    %v317 = vpop.f32.mrf.mxu0
    %318 = vmatprep.mubr.f32.mxu0 0.0
    %v319 = vand.u32 %v89, 4294901760
    %v320 = vsub.f32 %v89, %v319
    %v321 = vand.u32 %v320, 4294901760
    %v322 = vsub.f32 %v320, %v321
    %v323 = vand.u32 %v322, 4294901760
    %324 = vmatmul.mubr.f32.gmra.mxu0 %v323
    %v325 = vpop.f32.mrf.mxu0
    %v326 = vadd.f32 0.0, %v325
    %v327 = vpop.f32.mrf.mxu0
    %328 = vmatprep.mubr.f32.mxu0 0.0
    %v329 = vand.u32 %v90, 4294901760
    %v330 = vsub.f32 %v90, %v329
    %v331 = vand.u32 %v330, 4294901760
    %v332 = vsub.f32 %v330, %v331
    %v333 = vand.u32 %v332, 4294901760
    %334 = vmatmul.mubr.f32.gmra.mxu0 %v333
    %v335 = vpop.f32.mrf.mxu0
    %v336 = vadd.f32 0.0, %v335
    %v337 = vpop.f32.mrf.mxu0
    %338 = vmatprep.mubr.f32.mxu0 0.0
    %v339 = vand.u32 %v91, 4294901760
    %v340 = vsub.f32 %v91, %v339
    %v341 = vand.u32 %v340, 4294901760
    %v342 = vsub.f32 %v340, %v341
    %v343 = vand.u32 %v342, 4294901760
    %344 = vmatmul.mubr.f32.gmra.mxu0 %v343
    %v345 = vpop.f32.mrf.mxu0
    %v346 = vadd.f32 0.0, %v345
    %v347 = vpop.f32.mrf.mxu0
    %348 = vdwg.mxu0
    %349 = vmatprep.subr.mxu0 0.0
    %v350 = vand.u32 %v107, 4294901760
    %v351 = vsub.f32 %v107, %v350
    %v352 = vand.u32 %v351, 4294901760
    %v353 = vsub.f32 %v351, %v352
    %v354 = vand.u32 %v353, 4294901760
    %355 = vmatpush1.xpose.msra.mxu0 %v354
    %356 = vmatprep.subr.mxu0 0.0
    %v357 = vand.u32 %v106, 4294901760
    %v358 = vsub.f32 %v106, %v357
    %v359 = vand.u32 %v358, 4294901760
    %v360 = vsub.f32 %v358, %v359
    %v361 = vand.u32 %v360, 4294901760
    %362 = vmatpush1.xpose.msra.mxu0 %v361
    %363 = vmatprep.subr.mxu0 0.0
    %v364 = vand.u32 %v105, 4294901760
    %v365 = vsub.f32 %v105, %v364
    %v366 = vand.u32 %v365, 4294901760
    %v367 = vsub.f32 %v365, %v366
    %v368 = vand.u32 %v367, 4294901760
    %369 = vmatpush1.xpose.msra.mxu0 %v368
    %370 = vmatprep.subr.mxu0 0.0
    %v371 = vand.u32 %v104, 4294901760
    %v372 = vsub.f32 %v104, %v371
    %v373 = vand.u32 %v372, 4294901760
    %v374 = vsub.f32 %v372, %v373
    %v375 = vand.u32 %v374, 4294901760
    %376 = vmatpush1.xpose.msra.mxu0 %v375
    %377 = vmatprep.subr.mxu0 0.0
    %v378 = vand.u32 %v103, 4294901760
    %v379 = vsub.f32 %v103, %v378
    %v380 = vand.u32 %v379, 4294901760
    %v381 = vsub.f32 %v379, %v380
    %v382 = vand.u32 %v381, 4294901760
    %383 = vmatpush1.xpose.msra.mxu0 %v382
    %384 = vmatprep.subr.mxu0 0.0
    %v385 = vand.u32 %v102, 4294901760
    %v386 = vsub.f32 %v102, %v385
    %v387 = vand.u32 %v386, 4294901760
    %v388 = vsub.f32 %v386, %v387
    %v389 = vand.u32 %v388, 4294901760
    %390 = vmatpush1.xpose.msra.mxu0 %v389
    %391 = vmatprep.subr.mxu0 0.0
    %v392 = vand.u32 %v101, 4294901760
    %v393 = vsub.f32 %v101, %v392
    %v394 = vand.u32 %v393, 4294901760
    %v395 = vsub.f32 %v393, %v394
    %v396 = vand.u32 %v395, 4294901760
    %397 = vmatpush1.xpose.msra.mxu0 %v396
    %398 = vmatprep.subr.mxu0 0.0
    %v399 = vand.u32 %v100, 4294901760
    %v400 = vsub.f32 %v100, %v399
    %v401 = vand.u32 %v400, 4294901760
    %v402 = vsub.f32 %v400, %v401
    %v403 = vand.u32 %v402, 4294901760
    %404 = vmatpush1.xpose.msra.mxu0 %v403
    %405 = vmatprep.subr.mxu0 0.0
    %v406 = vand.u32 %v99, 4294901760
    %v407 = vsub.f32 %v99, %v406
    %v408 = vand.u32 %v407, 4294901760
    %v409 = vsub.f32 %v407, %v408
    %v410 = vand.u32 %v409, 4294901760
    %411 = vmatpush1.xpose.msra.mxu0 %v410
    %412 = vmatprep.subr.mxu0 0.0
    %v413 = vand.u32 %v98, 4294901760
    %v414 = vsub.f32 %v98, %v413
    %v415 = vand.u32 %v414, 4294901760
    %v416 = vsub.f32 %v414, %v415
    %v417 = vand.u32 %v416, 4294901760
    %418 = vmatpush1.xpose.msra.mxu0 %v417
    %419 = vmatprep.subr.mxu0 0.0
    %v420 = vand.u32 %v97, 4294901760
    %v421 = vsub.f32 %v97, %v420
    %v422 = vand.u32 %v421, 4294901760
    %v423 = vsub.f32 %v421, %v422
    %v424 = vand.u32 %v423, 4294901760
    %425 = vmatpush1.xpose.msra.mxu0 %v424
    %426 = vmatprep.subr.mxu0 0.0
    %v427 = vand.u32 %v96, 4294901760
    %v428 = vsub.f32 %v96, %v427
    %v429 = vand.u32 %v428, 4294901760
    %v430 = vsub.f32 %v428, %v429
    %v431 = vand.u32 %v430, 4294901760
    %432 = vmatpush1.xpose.msra.mxu0 %v431
    %433 = vmatprep.subr.mxu0 0.0
    %v434 = vand.u32 %v95, 4294901760
    %v435 = vsub.f32 %v95, %v434
    %v436 = vand.u32 %v435, 4294901760
    %v437 = vsub.f32 %v435, %v436
    %v438 = vand.u32 %v437, 4294901760
    %439 = vmatpush1.xpose.msra.mxu0 %v438
    %440 = vmatprep.subr.mxu0 0.0
    %v441 = vand.u32 %v94, 4294901760
    %v442 = vsub.f32 %v94, %v441
    %v443 = vand.u32 %v442, 4294901760
    %v444 = vsub.f32 %v442, %v443
    %v445 = vand.u32 %v444, 4294901760
    %446 = vmatpush1.xpose.msra.mxu0 %v445
    %447 = vmatprep.subr.mxu0 0.0
    %v448 = vand.u32 %v93, 4294901760
    %v449 = vsub.f32 %v93, %v448
    %v450 = vand.u32 %v449, 4294901760
    %v451 = vsub.f32 %v449, %v450
    %v452 = vand.u32 %v451, 4294901760
    %453 = vmatpush1.xpose.msra.mxu0 %v452
    %454 = vmatprep.subr.mxu0 0.0
    %v455 = vand.u32 %v92, 4294901760
    %v456 = vsub.f32 %v92, %v455
    %v457 = vand.u32 %v456, 4294901760
    %v458 = vsub.f32 %v456, %v457
    %v459 = vand.u32 %v458, 4294901760
    %460 = vmatpush1.xpose.msra.mxu0 %v459
    %461 = vmatprep.subr.mxu0 0.0
    %462 = vmatpush2.xpose.msra.mxu0 0.0
    %463 = vmatprep.subr.mxu0 0.0
    %464 = vmatpush2.xpose.msra.mxu0 0.0
    %465 = vmatprep.subr.mxu0 0.0
    %466 = vmatpush2.xpose.msra.mxu0 0.0
    %467 = vmatprep.subr.mxu0 0.0
    %468 = vmatpush2.xpose.msra.mxu0 0.0
    %469 = vmatprep.subr.mxu0 0.0
    %470 = vmatpush2.xpose.msra.mxu0 0.0
    %471 = vmatprep.subr.mxu0 0.0
    %472 = vmatpush2.xpose.msra.mxu0 0.0
    %473 = vmatprep.subr.mxu0 0.0
    %474 = vmatpush2.xpose.msra.mxu0 0.0
    %475 = vmatprep.subr.mxu0 0.0
    %476 = vmatpush2.xpose.msra.mxu0 0.0
    %477 = vmatprep.subr.mxu0 0.0
    %478 = vmatpush2.xpose.msra.mxu0 0.0
    %479 = vmatprep.subr.mxu0 0.0
    %480 = vmatpush2.xpose.msra.mxu0 0.0
    %481 = vmatprep.subr.mxu0 0.0
    %482 = vmatpush2.xpose.msra.mxu0 0.0
    %483 = vmatprep.subr.mxu0 0.0
    %484 = vmatpush2.xpose.msra.mxu0 0.0
    %485 = vmatprep.subr.mxu0 0.0
    %486 = vmatpush2.xpose.msra.mxu0 0.0
    %487 = vmatprep.subr.mxu0 0.0
    %488 = vmatpush2.xpose.msra.mxu0 0.0
    %489 = vmatprep.subr.mxu0 0.0
    %490 = vmatpush2.xpose.msra.mxu0 0.0
    %491 = vmatprep.subr.mxu0 0.0
    %492 = vmatpush2.xpose.msra.mxu0 0.0
    %493 = vmatprep.mubr.f32.mxu0 0.0
    %v494 = vand.u32 %v76, 4294901760
    %495 = vmatmul.mubr.f32.gmra.mxu0 %v494
    %v496 = vpop.f32.mrf.mxu0
    %v497 = vadd.f32 %v196, %v496
    %v498 = vpop.f32.mrf.mxu0
    %499 = vmatprep.mubr.f32.mxu0 0.0
    %v500 = vand.u32 %v77, 4294901760
    %501 = vmatmul.mubr.f32.gmra.mxu0 %v500
    %v502 = vpop.f32.mrf.mxu0
    %v503 = vadd.f32 %v206, %v502
    %v504 = vpop.f32.mrf.mxu0
    %505 = vmatprep.mubr.f32.mxu0 0.0
    %v506 = vand.u32 %v78, 4294901760
    %507 = vmatmul.mubr.f32.gmra.mxu0 %v506
    %v508 = vpop.f32.mrf.mxu0
    %v509 = vadd.f32 %v216, %v508
    %v510 = vpop.f32.mrf.mxu0
    %511 = vmatprep.mubr.f32.mxu0 0.0
    %v512 = vand.u32 %v79, 4294901760
    %513 = vmatmul.mubr.f32.gmra.mxu0 %v512
    %v514 = vpop.f32.mrf.mxu0
    %v515 = vadd.f32 %v226, %v514
    %v516 = vpop.f32.mrf.mxu0
    %517 = vmatprep.mubr.f32.mxu0 0.0
    %v518 = vand.u32 %v80, 4294901760
    %519 = vmatmul.mubr.f32.gmra.mxu0 %v518
    %v520 = vpop.f32.mrf.mxu0
    %v521 = vadd.f32 %v236, %v520
    %v522 = vpop.f32.mrf.mxu0
    %523 = vmatprep.mubr.f32.mxu0 0.0
    %v524 = vand.u32 %v81, 4294901760
    %525 = vmatmul.mubr.f32.gmra.mxu0 %v524
    %v526 = vpop.f32.mrf.mxu0
    %v527 = vadd.f32 %v246, %v526
    %v528 = vpop.f32.mrf.mxu0
    %529 = vmatprep.mubr.f32.mxu0 0.0
    %v530 = vand.u32 %v82, 4294901760
    %531 = vmatmul.mubr.f32.gmra.mxu0 %v530
    %v532 = vpop.f32.mrf.mxu0
    %v533 = vadd.f32 %v256, %v532
    %v534 = vpop.f32.mrf.mxu0
    %535 = vmatprep.mubr.f32.mxu0 0.0
    %v536 = vand.u32 %v83, 4294901760
    %537 = vmatmul.mubr.f32.gmra.mxu0 %v536
    %v538 = vpop.f32.mrf.mxu0
    %v539 = vadd.f32 %v266, %v538
    %v540 = vpop.f32.mrf.mxu0
    %541 = vmatprep.mubr.f32.mxu0 0.0
    %v542 = vand.u32 %v84, 4294901760
    %543 = vmatmul.mubr.f32.gmra.mxu0 %v542
    %v544 = vpop.f32.mrf.mxu0
    %v545 = vadd.f32 %v276, %v544
    %v546 = vpop.f32.mrf.mxu0
    %547 = vmatprep.mubr.f32.mxu0 0.0
    %v548 = vand.u32 %v85, 4294901760
    %549 = vmatmul.mubr.f32.gmra.mxu0 %v548
    %v550 = vpop.f32.mrf.mxu0
    %v551 = vadd.f32 %v286, %v550
    %v552 = vpop.f32.mrf.mxu0
    %553 = vmatprep.mubr.f32.mxu0 0.0
    %v554 = vand.u32 %v86, 4294901760
    %555 = vmatmul.mubr.f32.gmra.mxu0 %v554
    %v556 = vpop.f32.mrf.mxu0
    %v557 = vadd.f32 %v296, %v556
    %v558 = vpop.f32.mrf.mxu0
    %559 = vmatprep.mubr.f32.mxu0 0.0
    %v560 = vand.u32 %v87, 4294901760
    %561 = vmatmul.mubr.f32.gmra.mxu0 %v560
    %v562 = vpop.f32.mrf.mxu0
    %v563 = vadd.f32 %v306, %v562
    %v564 = vpop.f32.mrf.mxu0
    %565 = vmatprep.mubr.f32.mxu0 0.0
    %v566 = vand.u32 %v88, 4294901760
    %567 = vmatmul.mubr.f32.gmra.mxu0 %v566
    %v568 = vpop.f32.mrf.mxu0
    %v569 = vadd.f32 %v316, %v568
    %v570 = vpop.f32.mrf.mxu0
    %571 = vmatprep.mubr.f32.mxu0 0.0
    %v572 = vand.u32 %v89, 4294901760
    %573 = vmatmul.mubr.f32.gmra.mxu0 %v572
    %v574 = vpop.f32.mrf.mxu0
    %v575 = vadd.f32 %v326, %v574
    %v576 = vpop.f32.mrf.mxu0
    %577 = vmatprep.mubr.f32.mxu0 0.0
    %v578 = vand.u32 %v90, 4294901760
    %579 = vmatmul.mubr.f32.gmra.mxu0 %v578
    %v580 = vpop.f32.mrf.mxu0
    %v581 = vadd.f32 %v336, %v580
    %v582 = vpop.f32.mrf.mxu0
    %583 = vmatprep.mubr.f32.mxu0 0.0
    %v584 = vand.u32 %v91, 4294901760
    %585 = vmatmul.mubr.f32.gmra.mxu0 %v584
    %v586 = vpop.f32.mrf.mxu0
    %v587 = vadd.f32 %v346, %v586
    %v588 = vpop.f32.mrf.mxu0
    %589 = vdwg.mxu0
    %590 = vmatprep.subr.mxu0 0.0
    %v591 = vand.u32 %v107, 4294901760
    %v592 = vsub.f32 %v107, %v591
    %593 = vmatpush1.xpose.msra.mxu0 %v592
    %594 = vmatprep.subr.mxu0 0.0
    %v595 = vand.u32 %v106, 4294901760
    %v596 = vsub.f32 %v106, %v595
    %597 = vmatpush1.xpose.msra.mxu0 %v596
    %598 = vmatprep.subr.mxu0 0.0
    %v599 = vand.u32 %v105, 4294901760
    %v600 = vsub.f32 %v105, %v599
    %601 = vmatpush1.xpose.msra.mxu0 %v600
    %602 = vmatprep.subr.mxu0 0.0
    %v603 = vand.u32 %v104, 4294901760
    %v604 = vsub.f32 %v104, %v603
    %605 = vmatpush1.xpose.msra.mxu0 %v604
    %606 = vmatprep.subr.mxu0 0.0
    %v607 = vand.u32 %v103, 4294901760
    %v608 = vsub.f32 %v103, %v607
    %609 = vmatpush1.xpose.msra.mxu0 %v608
    %610 = vmatprep.subr.mxu0 0.0
    %v611 = vand.u32 %v102, 4294901760
    %v612 = vsub.f32 %v102, %v611
    %613 = vmatpush1.xpose.msra.mxu0 %v612
    %614 = vmatprep.subr.mxu0 0.0
    %v615 = vand.u32 %v101, 4294901760
    %v616 = vsub.f32 %v101, %v615
    %617 = vmatpush1.xpose.msra.mxu0 %v616
    %618 = vmatprep.subr.mxu0 0.0
    %v619 = vand.u32 %v100, 4294901760
    %v620 = vsub.f32 %v100, %v619
    %621 = vmatpush1.xpose.msra.mxu0 %v620
    %622 = vmatprep.subr.mxu0 0.0
    %v623 = vand.u32 %v99, 4294901760
    %v624 = vsub.f32 %v99, %v623
    %625 = vmatpush1.xpose.msra.mxu0 %v624
    %626 = vmatprep.subr.mxu0 0.0
    %v627 = vand.u32 %v98, 4294901760
    %v628 = vsub.f32 %v98, %v627
    %629 = vmatpush1.xpose.msra.mxu0 %v628
    %630 = vmatprep.subr.mxu0 0.0
    %v631 = vand.u32 %v97, 4294901760
    %v632 = vsub.f32 %v97, %v631
    %633 = vmatpush1.xpose.msra.mxu0 %v632
    %634 = vmatprep.subr.mxu0 0.0
    %v635 = vand.u32 %v96, 4294901760
    %v636 = vsub.f32 %v96, %v635
    %637 = vmatpush1.xpose.msra.mxu0 %v636
    %638 = vmatprep.subr.mxu0 0.0
    %v639 = vand.u32 %v95, 4294901760
    %v640 = vsub.f32 %v95, %v639
    %641 = vmatpush1.xpose.msra.mxu0 %v640
    %642 = vmatprep.subr.mxu0 0.0
    %v643 = vand.u32 %v94, 4294901760
    %v644 = vsub.f32 %v94, %v643
    %645 = vmatpush1.xpose.msra.mxu0 %v644
    %646 = vmatprep.subr.mxu0 0.0
    %v647 = vand.u32 %v93, 4294901760
    %v648 = vsub.f32 %v93, %v647
    %649 = vmatpush1.xpose.msra.mxu0 %v648
    %650 = vmatprep.subr.mxu0 0.0
    %v651 = vand.u32 %v92, 4294901760
    %v652 = vsub.f32 %v92, %v651
    %653 = vmatpush1.xpose.msra.mxu0 %v652
    %654 = vmatprep.subr.mxu0 0.0
    %655 = vmatpush2.xpose.msra.mxu0 0.0
    %656 = vmatprep.subr.mxu0 0.0
    %657 = vmatpush2.xpose.msra.mxu0 0.0
    %658 = vmatprep.subr.mxu0 0.0
    %659 = vmatpush2.xpose.msra.mxu0 0.0
    %660 = vmatprep.subr.mxu0 0.0
    %661 = vmatpush2.xpose.msra.mxu0 0.0
    %662 = vmatprep.subr.mxu0 0.0
    %663 = vmatpush2.xpose.msra.mxu0 0.0
    %664 = vmatprep.subr.mxu0 0.0
    %665 = vmatpush2.xpose.msra.mxu0 0.0
    %666 = vmatprep.subr.mxu0 0.0
    %667 = vmatpush2.xpose.msra.mxu0 0.0
    %668 = vmatprep.subr.mxu0 0.0
    %669 = vmatpush2.xpose.msra.mxu0 0.0
    %670 = vmatprep.subr.mxu0 0.0
    %671 = vmatpush2.xpose.msra.mxu0 0.0
    %672 = vmatprep.subr.mxu0 0.0
    %673 = vmatpush2.xpose.msra.mxu0 0.0
    %674 = vmatprep.subr.mxu0 0.0
    %675 = vmatpush2.xpose.msra.mxu0 0.0
    %676 = vmatprep.subr.mxu0 0.0
    %677 = vmatpush2.xpose.msra.mxu0 0.0
    %678 = vmatprep.subr.mxu0 0.0
    %679 = vmatpush2.xpose.msra.mxu0 0.0
    %680 = vmatprep.subr.mxu0 0.0
    %681 = vmatpush2.xpose.msra.mxu0 0.0
    %682 = vmatprep.subr.mxu0 0.0
    %683 = vmatpush2.xpose.msra.mxu0 0.0
    %684 = vmatprep.subr.mxu0 0.0
    %685 = vmatpush2.xpose.msra.mxu0 0.0
    %686 = vmatprep.mubr.f32.mxu0 0.0
    %v687 = vand.u32 %v76, 4294901760
    %v688 = vsub.f32 %v76, %v687
    %689 = vmatmul.mubr.f32.gmra.mxu0 %v688
    %v690 = vpop.f32.mrf.mxu0
    %v691 = vadd.f32 %v497, %v690
    %v692 = vpop.f32.mrf.mxu0
    %693 = vmatprep.mubr.f32.mxu0 0.0
    %v694 = vand.u32 %v77, 4294901760
    %v695 = vsub.f32 %v77, %v694
    %696 = vmatmul.mubr.f32.gmra.mxu0 %v695
    %v697 = vpop.f32.mrf.mxu0
    %v698 = vadd.f32 %v503, %v697
    %v699 = vpop.f32.mrf.mxu0
    %700 = vmatprep.mubr.f32.mxu0 0.0
    %v701 = vand.u32 %v78, 4294901760
    %v702 = vsub.f32 %v78, %v701
    %703 = vmatmul.mubr.f32.gmra.mxu0 %v702
    %v704 = vpop.f32.mrf.mxu0
    %v705 = vadd.f32 %v509, %v704
    %v706 = vpop.f32.mrf.mxu0
    %707 = vmatprep.mubr.f32.mxu0 0.0
    %v708 = vand.u32 %v79, 4294901760
    %v709 = vsub.f32 %v79, %v708
    %710 = vmatmul.mubr.f32.gmra.mxu0 %v709
    %v711 = vpop.f32.mrf.mxu0
    %v712 = vadd.f32 %v515, %v711
    %v713 = vpop.f32.mrf.mxu0
    %714 = vmatprep.mubr.f32.mxu0 0.0
    %v715 = vand.u32 %v80, 4294901760
    %v716 = vsub.f32 %v80, %v715
    %717 = vmatmul.mubr.f32.gmra.mxu0 %v716
    %v718 = vpop.f32.mrf.mxu0
    %v719 = vadd.f32 %v521, %v718
    %v720 = vpop.f32.mrf.mxu0
    %721 = vmatprep.mubr.f32.mxu0 0.0
    %v722 = vand.u32 %v81, 4294901760
    %v723 = vsub.f32 %v81, %v722
    %724 = vmatmul.mubr.f32.gmra.mxu0 %v723
    %v725 = vpop.f32.mrf.mxu0
    %v726 = vadd.f32 %v527, %v725
    %v727 = vpop.f32.mrf.mxu0
    %728 = vmatprep.mubr.f32.mxu0 0.0
    %v729 = vand.u32 %v82, 4294901760
    %v730 = vsub.f32 %v82, %v729
    %731 = vmatmul.mubr.f32.gmra.mxu0 %v730
    %v732 = vpop.f32.mrf.mxu0
    %v733 = vadd.f32 %v533, %v732
    %v734 = vpop.f32.mrf.mxu0
    %735 = vmatprep.mubr.f32.mxu0 0.0
    %v736 = vand.u32 %v83, 4294901760
    %v737 = vsub.f32 %v83, %v736
    %738 = vmatmul.mubr.f32.gmra.mxu0 %v737
    %v739 = vpop.f32.mrf.mxu0
    %v740 = vadd.f32 %v539, %v739
    %v741 = vpop.f32.mrf.mxu0
    %742 = vmatprep.mubr.f32.mxu0 0.0
    %v743 = vand.u32 %v84, 4294901760
    %v744 = vsub.f32 %v84, %v743
    %745 = vmatmul.mubr.f32.gmra.mxu0 %v744
    %v746 = vpop.f32.mrf.mxu0
    %v747 = vadd.f32 %v545, %v746
    %v748 = vpop.f32.mrf.mxu0
    %749 = vmatprep.mubr.f32.mxu0 0.0
    %v750 = vand.u32 %v85, 4294901760
    %v751 = vsub.f32 %v85, %v750
    %752 = vmatmul.mubr.f32.gmra.mxu0 %v751
    %v753 = vpop.f32.mrf.mxu0
    %v754 = vadd.f32 %v551, %v753
    %v755 = vpop.f32.mrf.mxu0
    %756 = vmatprep.mubr.f32.mxu0 0.0
    %v757 = vand.u32 %v86, 4294901760
    %v758 = vsub.f32 %v86, %v757
    %759 = vmatmul.mubr.f32.gmra.mxu0 %v758
    %v760 = vpop.f32.mrf.mxu0
    %v761 = vadd.f32 %v557, %v760
    %v762 = vpop.f32.mrf.mxu0
    %763 = vmatprep.mubr.f32.mxu0 0.0
    %v764 = vand.u32 %v87, 4294901760
    %v765 = vsub.f32 %v87, %v764
    %766 = vmatmul.mubr.f32.gmra.mxu0 %v765
    %v767 = vpop.f32.mrf.mxu0
    %v768 = vadd.f32 %v563, %v767
    %v769 = vpop.f32.mrf.mxu0
    %770 = vmatprep.mubr.f32.mxu0 0.0
    %v771 = vand.u32 %v88, 4294901760
    %v772 = vsub.f32 %v88, %v771
    %773 = vmatmul.mubr.f32.gmra.mxu0 %v772
    %v774 = vpop.f32.mrf.mxu0
    %v775 = vadd.f32 %v569, %v774
    %v776 = vpop.f32.mrf.mxu0
    %777 = vmatprep.mubr.f32.mxu0 0.0
    %v778 = vand.u32 %v89, 4294901760
    %v779 = vsub.f32 %v89, %v778
    %780 = vmatmul.mubr.f32.gmra.mxu0 %v779
    %v781 = vpop.f32.mrf.mxu0
    %v782 = vadd.f32 %v575, %v781
    %v783 = vpop.f32.mrf.mxu0
    %784 = vmatprep.mubr.f32.mxu0 0.0
    %v785 = vand.u32 %v90, 4294901760
    %v786 = vsub.f32 %v90, %v785
    %787 = vmatmul.mubr.f32.gmra.mxu0 %v786
    %v788 = vpop.f32.mrf.mxu0
    %v789 = vadd.f32 %v581, %v788
    %v790 = vpop.f32.mrf.mxu0
    %791 = vmatprep.mubr.f32.mxu0 0.0
    %v792 = vand.u32 %v91, 4294901760
    %v793 = vsub.f32 %v91, %v792
    %794 = vmatmul.mubr.f32.gmra.mxu0 %v793
    %v795 = vpop.f32.mrf.mxu0
    %v796 = vadd.f32 %v587, %v795
    %v797 = vpop.f32.mrf.mxu0
    %798 = vdwg.mxu0
    %799 = vmatprep.subr.mxu0 0.0
    %v800 = vand.u32 %v107, 4294901760
    %801 = vmatpush1.xpose.msra.mxu0 %v800
    %802 = vmatprep.subr.mxu0 0.0
    %v803 = vand.u32 %v106, 4294901760
    %804 = vmatpush1.xpose.msra.mxu0 %v803
    %805 = vmatprep.subr.mxu0 0.0
    %v806 = vand.u32 %v105, 4294901760
    %807 = vmatpush1.xpose.msra.mxu0 %v806
    %808 = vmatprep.subr.mxu0 0.0
    %v809 = vand.u32 %v104, 4294901760
    %810 = vmatpush1.xpose.msra.mxu0 %v809
    %811 = vmatprep.subr.mxu0 0.0
    %v812 = vand.u32 %v103, 4294901760
    %813 = vmatpush1.xpose.msra.mxu0 %v812
    %814 = vmatprep.subr.mxu0 0.0
    %v815 = vand.u32 %v102, 4294901760
    %816 = vmatpush1.xpose.msra.mxu0 %v815
    %817 = vmatprep.subr.mxu0 0.0
    %v818 = vand.u32 %v101, 4294901760
    %819 = vmatpush1.xpose.msra.mxu0 %v818
    %820 = vmatprep.subr.mxu0 0.0
    %v821 = vand.u32 %v100, 4294901760
    %822 = vmatpush1.xpose.msra.mxu0 %v821
    %823 = vmatprep.subr.mxu0 0.0
    %v824 = vand.u32 %v99, 4294901760
    %825 = vmatpush1.xpose.msra.mxu0 %v824
    %826 = vmatprep.subr.mxu0 0.0
    %v827 = vand.u32 %v98, 4294901760
    %828 = vmatpush1.xpose.msra.mxu0 %v827
    %829 = vmatprep.subr.mxu0 0.0
    %v830 = vand.u32 %v97, 4294901760
    %831 = vmatpush1.xpose.msra.mxu0 %v830
    %832 = vmatprep.subr.mxu0 0.0
    %v833 = vand.u32 %v96, 4294901760
    %834 = vmatpush1.xpose.msra.mxu0 %v833
    %835 = vmatprep.subr.mxu0 0.0
    %v836 = vand.u32 %v95, 4294901760
    %837 = vmatpush1.xpose.msra.mxu0 %v836
    %838 = vmatprep.subr.mxu0 0.0
    %v839 = vand.u32 %v94, 4294901760
    %840 = vmatpush1.xpose.msra.mxu0 %v839
    %841 = vmatprep.subr.mxu0 0.0
    %v842 = vand.u32 %v93, 4294901760
    %843 = vmatpush1.xpose.msra.mxu0 %v842
    %844 = vmatprep.subr.mxu0 0.0
    %v845 = vand.u32 %v92, 4294901760
    %846 = vmatpush1.xpose.msra.mxu0 %v845
    %847 = vmatprep.subr.mxu0 0.0
    %848 = vmatpush2.xpose.msra.mxu0 0.0
    %849 = vmatprep.subr.mxu0 0.0
    %850 = vmatpush2.xpose.msra.mxu0 0.0
    %851 = vmatprep.subr.mxu0 0.0
    %852 = vmatpush2.xpose.msra.mxu0 0.0
    %853 = vmatprep.subr.mxu0 0.0
    %854 = vmatpush2.xpose.msra.mxu0 0.0
    %855 = vmatprep.subr.mxu0 0.0
    %856 = vmatpush2.xpose.msra.mxu0 0.0
    %857 = vmatprep.subr.mxu0 0.0
    %858 = vmatpush2.xpose.msra.mxu0 0.0
    %859 = vmatprep.subr.mxu0 0.0
    %860 = vmatpush2.xpose.msra.mxu0 0.0
    %861 = vmatprep.subr.mxu0 0.0
    %862 = vmatpush2.xpose.msra.mxu0 0.0
    %863 = vmatprep.subr.mxu0 0.0
    %864 = vmatpush2.xpose.msra.mxu0 0.0
    %865 = vmatprep.subr.mxu0 0.0
    %866 = vmatpush2.xpose.msra.mxu0 0.0
    %867 = vmatprep.subr.mxu0 0.0
    %868 = vmatpush2.xpose.msra.mxu0 0.0
    %869 = vmatprep.subr.mxu0 0.0
    %870 = vmatpush2.xpose.msra.mxu0 0.0
    %871 = vmatprep.subr.mxu0 0.0
    %872 = vmatpush2.xpose.msra.mxu0 0.0
    %873 = vmatprep.subr.mxu0 0.0
    %874 = vmatpush2.xpose.msra.mxu0 0.0
    %875 = vmatprep.subr.mxu0 0.0
    %876 = vmatpush2.xpose.msra.mxu0 0.0
    %877 = vmatprep.subr.mxu0 0.0
    %878 = vmatpush2.xpose.msra.mxu0 0.0
    %879 = vmatprep.mubr.f32.mxu0 0.0
    %v880 = vand.u32 %v76, 4294901760
    %v881 = vsub.f32 %v76, %v880
    %v882 = vand.u32 %v881, 4294901760
    %883 = vmatmul.mubr.f32.gmra.mxu0 %v882
    %v884 = vpop.f32.mrf.mxu0
    %v885 = vadd.f32 %v691, %v884
    %v886 = vpop.f32.mrf.mxu0
    %887 = vmatprep.mubr.f32.mxu0 0.0
    %v888 = vand.u32 %v77, 4294901760
    %v889 = vsub.f32 %v77, %v888
    %v890 = vand.u32 %v889, 4294901760
    %891 = vmatmul.mubr.f32.gmra.mxu0 %v890
    %v892 = vpop.f32.mrf.mxu0
    %v893 = vadd.f32 %v698, %v892
    %v894 = vpop.f32.mrf.mxu0
    %895 = vmatprep.mubr.f32.mxu0 0.0
    %v896 = vand.u32 %v78, 4294901760
    %v897 = vsub.f32 %v78, %v896
    %v898 = vand.u32 %v897, 4294901760
    %899 = vmatmul.mubr.f32.gmra.mxu0 %v898
    %v900 = vpop.f32.mrf.mxu0
    %v901 = vadd.f32 %v705, %v900
    %v902 = vpop.f32.mrf.mxu0
    %903 = vmatprep.mubr.f32.mxu0 0.0
    %v904 = vand.u32 %v79, 4294901760
    %v905 = vsub.f32 %v79, %v904
    %v906 = vand.u32 %v905, 4294901760
    %907 = vmatmul.mubr.f32.gmra.mxu0 %v906
    %v908 = vpop.f32.mrf.mxu0
    %v909 = vadd.f32 %v712, %v908
    %v910 = vpop.f32.mrf.mxu0
    %911 = vmatprep.mubr.f32.mxu0 0.0
    %v912 = vand.u32 %v80, 4294901760
    %v913 = vsub.f32 %v80, %v912
    %v914 = vand.u32 %v913, 4294901760
    %915 = vmatmul.mubr.f32.gmra.mxu0 %v914
    %v916 = vpop.f32.mrf.mxu0
    %v917 = vadd.f32 %v719, %v916
    %v918 = vpop.f32.mrf.mxu0
    %919 = vmatprep.mubr.f32.mxu0 0.0
    %v920 = vand.u32 %v81, 4294901760
    %v921 = vsub.f32 %v81, %v920
    %v922 = vand.u32 %v921, 4294901760
    %923 = vmatmul.mubr.f32.gmra.mxu0 %v922
    %v924 = vpop.f32.mrf.mxu0
    %v925 = vadd.f32 %v726, %v924
    %v926 = vpop.f32.mrf.mxu0
    %927 = vmatprep.mubr.f32.mxu0 0.0
    %v928 = vand.u32 %v82, 4294901760
    %v929 = vsub.f32 %v82, %v928
    %v930 = vand.u32 %v929, 4294901760
    %931 = vmatmul.mubr.f32.gmra.mxu0 %v930
    %v932 = vpop.f32.mrf.mxu0
    %v933 = vadd.f32 %v733, %v932
    %v934 = vpop.f32.mrf.mxu0
    %935 = vmatprep.mubr.f32.mxu0 0.0
    %v936 = vand.u32 %v83, 4294901760
    %v937 = vsub.f32 %v83, %v936
    %v938 = vand.u32 %v937, 4294901760
    %939 = vmatmul.mubr.f32.gmra.mxu0 %v938
    %v940 = vpop.f32.mrf.mxu0
    %v941 = vadd.f32 %v740, %v940
    %v942 = vpop.f32.mrf.mxu0
    %943 = vmatprep.mubr.f32.mxu0 0.0
    %v944 = vand.u32 %v84, 4294901760
    %v945 = vsub.f32 %v84, %v944
    %v946 = vand.u32 %v945, 4294901760
    %947 = vmatmul.mubr.f32.gmra.mxu0 %v946
    %v948 = vpop.f32.mrf.mxu0
    %v949 = vadd.f32 %v747, %v948
    %v950 = vpop.f32.mrf.mxu0
    %951 = vmatprep.mubr.f32.mxu0 0.0
    %v952 = vand.u32 %v85, 4294901760
    %v953 = vsub.f32 %v85, %v952
    %v954 = vand.u32 %v953, 4294901760
    %955 = vmatmul.mubr.f32.gmra.mxu0 %v954
    %v956 = vpop.f32.mrf.mxu0
    %v957 = vadd.f32 %v754, %v956
    %v958 = vpop.f32.mrf.mxu0
    %959 = vmatprep.mubr.f32.mxu0 0.0
    %v960 = vand.u32 %v86, 4294901760
    %v961 = vsub.f32 %v86, %v960
    %v962 = vand.u32 %v961, 4294901760
    %963 = vmatmul.mubr.f32.gmra.mxu0 %v962
    %v964 = vpop.f32.mrf.mxu0
    %v965 = vadd.f32 %v761, %v964
    %v966 = vpop.f32.mrf.mxu0
    %967 = vmatprep.mubr.f32.mxu0 0.0
    %v968 = vand.u32 %v87, 4294901760
    %v969 = vsub.f32 %v87, %v968
    %v970 = vand.u32 %v969, 4294901760
    %971 = vmatmul.mubr.f32.gmra.mxu0 %v970
    %v972 = vpop.f32.mrf.mxu0
    %v973 = vadd.f32 %v768, %v972
    %v974 = vpop.f32.mrf.mxu0
    %975 = vmatprep.mubr.f32.mxu0 0.0
    %v976 = vand.u32 %v88, 4294901760
    %v977 = vsub.f32 %v88, %v976
    %v978 = vand.u32 %v977, 4294901760
    %979 = vmatmul.mubr.f32.gmra.mxu0 %v978
    %v980 = vpop.f32.mrf.mxu0
    %v981 = vadd.f32 %v775, %v980
    %v982 = vpop.f32.mrf.mxu0
    %983 = vmatprep.mubr.f32.mxu0 0.0
    %v984 = vand.u32 %v89, 4294901760
    %v985 = vsub.f32 %v89, %v984
    %v986 = vand.u32 %v985, 4294901760
    %987 = vmatmul.mubr.f32.gmra.mxu0 %v986
    %v988 = vpop.f32.mrf.mxu0
    %v989 = vadd.f32 %v782, %v988
    %v990 = vpop.f32.mrf.mxu0
    %991 = vmatprep.mubr.f32.mxu0 0.0
    %v992 = vand.u32 %v90, 4294901760
    %v993 = vsub.f32 %v90, %v992
    %v994 = vand.u32 %v993, 4294901760
    %995 = vmatmul.mubr.f32.gmra.mxu0 %v994
    %v996 = vpop.f32.mrf.mxu0
    %v997 = vadd.f32 %v789, %v996
    %v998 = vpop.f32.mrf.mxu0
    %999 = vmatprep.mubr.f32.mxu0 0.0
    %v1000 = vand.u32 %v91, 4294901760
    %v1001 = vsub.f32 %v91, %v1000
    %v1002 = vand.u32 %v1001, 4294901760
    %1003 = vmatmul.mubr.f32.gmra.mxu0 %v1002
    %v1004 = vpop.f32.mrf.mxu0
    %v1005 = vadd.f32 %v796, %v1004
    %v1006 = vpop.f32.mrf.mxu0
    %1007 = vdwg.mxu0
    %1008 = vmatprep.subr.mxu0 0.0
    %v1009 = vand.u32 %v107, 4294901760
    %v1010 = vsub.f32 %v107, %v1009
    %v1011 = vand.u32 %v1010, 4294901760
    %1012 = vmatpush1.xpose.msra.mxu0 %v1011
    %1013 = vmatprep.subr.mxu0 0.0
    %v1014 = vand.u32 %v106, 4294901760
    %v1015 = vsub.f32 %v106, %v1014
    %v1016 = vand.u32 %v1015, 4294901760
    %1017 = vmatpush1.xpose.msra.mxu0 %v1016
    %1018 = vmatprep.subr.mxu0 0.0
    %v1019 = vand.u32 %v105, 4294901760
    %v1020 = vsub.f32 %v105, %v1019
    %v1021 = vand.u32 %v1020, 4294901760
    %1022 = vmatpush1.xpose.msra.mxu0 %v1021
    %1023 = vmatprep.subr.mxu0 0.0
    %v1024 = vand.u32 %v104, 4294901760
    %v1025 = vsub.f32 %v104, %v1024
    %v1026 = vand.u32 %v1025, 4294901760
    %1027 = vmatpush1.xpose.msra.mxu0 %v1026
    %1028 = vmatprep.subr.mxu0 0.0
    %v1029 = vand.u32 %v103, 4294901760
    %v1030 = vsub.f32 %v103, %v1029
    %v1031 = vand.u32 %v1030, 4294901760
    %1032 = vmatpush1.xpose.msra.mxu0 %v1031
    %1033 = vmatprep.subr.mxu0 0.0
    %v1034 = vand.u32 %v102, 4294901760
    %v1035 = vsub.f32 %v102, %v1034
    %v1036 = vand.u32 %v1035, 4294901760
    %1037 = vmatpush1.xpose.msra.mxu0 %v1036
    %1038 = vmatprep.subr.mxu0 0.0
    %v1039 = vand.u32 %v101, 4294901760
    %v1040 = vsub.f32 %v101, %v1039
    %v1041 = vand.u32 %v1040, 4294901760
    %1042 = vmatpush1.xpose.msra.mxu0 %v1041
    %1043 = vmatprep.subr.mxu0 0.0
    %v1044 = vand.u32 %v100, 4294901760
    %v1045 = vsub.f32 %v100, %v1044
    %v1046 = vand.u32 %v1045, 4294901760
    %1047 = vmatpush1.xpose.msra.mxu0 %v1046
    %1048 = vmatprep.subr.mxu0 0.0
    %v1049 = vand.u32 %v99, 4294901760
    %v1050 = vsub.f32 %v99, %v1049
    %v1051 = vand.u32 %v1050, 4294901760
    %1052 = vmatpush1.xpose.msra.mxu0 %v1051
    %1053 = vmatprep.subr.mxu0 0.0
    %v1054 = vand.u32 %v98, 4294901760
    %v1055 = vsub.f32 %v98, %v1054
    %v1056 = vand.u32 %v1055, 4294901760
    %1057 = vmatpush1.xpose.msra.mxu0 %v1056
    %1058 = vmatprep.subr.mxu0 0.0
    %v1059 = vand.u32 %v97, 4294901760
    %v1060 = vsub.f32 %v97, %v1059
    %v1061 = vand.u32 %v1060, 4294901760
    %1062 = vmatpush1.xpose.msra.mxu0 %v1061
    %1063 = vmatprep.subr.mxu0 0.0
    %v1064 = vand.u32 %v96, 4294901760
    %v1065 = vsub.f32 %v96, %v1064
    %v1066 = vand.u32 %v1065, 4294901760
    %1067 = vmatpush1.xpose.msra.mxu0 %v1066
    %1068 = vmatprep.subr.mxu0 0.0
    %v1069 = vand.u32 %v95, 4294901760
    %v1070 = vsub.f32 %v95, %v1069
    %v1071 = vand.u32 %v1070, 4294901760
    %1072 = vmatpush1.xpose.msra.mxu0 %v1071
    %1073 = vmatprep.subr.mxu0 0.0
    %v1074 = vand.u32 %v94, 4294901760
    %v1075 = vsub.f32 %v94, %v1074
    %v1076 = vand.u32 %v1075, 4294901760
    %1077 = vmatpush1.xpose.msra.mxu0 %v1076
    %1078 = vmatprep.subr.mxu0 0.0
    %v1079 = vand.u32 %v93, 4294901760
    %v1080 = vsub.f32 %v93, %v1079
    %v1081 = vand.u32 %v1080, 4294901760
    %1082 = vmatpush1.xpose.msra.mxu0 %v1081
    %1083 = vmatprep.subr.mxu0 0.0
    %v1084 = vand.u32 %v92, 4294901760
    %v1085 = vsub.f32 %v92, %v1084
    %v1086 = vand.u32 %v1085, 4294901760
    %1087 = vmatpush1.xpose.msra.mxu0 %v1086
    %1088 = vmatprep.subr.mxu0 0.0
    %1089 = vmatpush2.xpose.msra.mxu0 0.0
    %1090 = vmatprep.subr.mxu0 0.0
    %1091 = vmatpush2.xpose.msra.mxu0 0.0
    %1092 = vmatprep.subr.mxu0 0.0
    %1093 = vmatpush2.xpose.msra.mxu0 0.0
    %1094 = vmatprep.subr.mxu0 0.0
    %1095 = vmatpush2.xpose.msra.mxu0 0.0
    %1096 = vmatprep.subr.mxu0 0.0
    %1097 = vmatpush2.xpose.msra.mxu0 0.0
    %1098 = vmatprep.subr.mxu0 0.0
    %1099 = vmatpush2.xpose.msra.mxu0 0.0
    %1100 = vmatprep.subr.mxu0 0.0
    %1101 = vmatpush2.xpose.msra.mxu0 0.0
    %1102 = vmatprep.subr.mxu0 0.0
    %1103 = vmatpush2.xpose.msra.mxu0 0.0
    %1104 = vmatprep.subr.mxu0 0.0
    %1105 = vmatpush2.xpose.msra.mxu0 0.0
    %1106 = vmatprep.subr.mxu0 0.0
    %1107 = vmatpush2.xpose.msra.mxu0 0.0
    %1108 = vmatprep.subr.mxu0 0.0
    %1109 = vmatpush2.xpose.msra.mxu0 0.0
    %1110 = vmatprep.subr.mxu0 0.0
    %1111 = vmatpush2.xpose.msra.mxu0 0.0
    %1112 = vmatprep.subr.mxu0 0.0
    %1113 = vmatpush2.xpose.msra.mxu0 0.0
    %1114 = vmatprep.subr.mxu0 0.0
    %1115 = vmatpush2.xpose.msra.mxu0 0.0
    %1116 = vmatprep.subr.mxu0 0.0
    %1117 = vmatpush2.xpose.msra.mxu0 0.0
    %1118 = vmatprep.subr.mxu0 0.0
    %1119 = vmatpush2.xpose.msra.mxu0 0.0
    %1120 = vmatprep.mubr.f32.mxu0 0.0
    %v1121 = vand.u32 %v76, 4294901760
    %1122 = vmatmul.mubr.f32.gmra.mxu0 %v1121
    %v1123 = vpop.f32.mrf.mxu0
    %v1124 = vadd.f32 %v885, %v1123
    %v1125 = vpop.f32.mrf.mxu0
    %1126 = vmatprep.mubr.f32.mxu0 0.0
    %v1127 = vand.u32 %v77, 4294901760
    %1128 = vmatmul.mubr.f32.gmra.mxu0 %v1127
    %v1129 = vpop.f32.mrf.mxu0
    %v1130 = vadd.f32 %v893, %v1129
    %v1131 = vpop.f32.mrf.mxu0
    %1132 = vmatprep.mubr.f32.mxu0 0.0
    %v1133 = vand.u32 %v78, 4294901760
    %1134 = vmatmul.mubr.f32.gmra.mxu0 %v1133
    %v1135 = vpop.f32.mrf.mxu0
    %v1136 = vadd.f32 %v901, %v1135
    %v1137 = vpop.f32.mrf.mxu0
    %1138 = vmatprep.mubr.f32.mxu0 0.0
    %v1139 = vand.u32 %v79, 4294901760
    %1140 = vmatmul.mubr.f32.gmra.mxu0 %v1139
    %v1141 = vpop.f32.mrf.mxu0
    %v1142 = vadd.f32 %v909, %v1141
    %v1143 = vpop.f32.mrf.mxu0
    %1144 = vmatprep.mubr.f32.mxu0 0.0
    %v1145 = vand.u32 %v80, 4294901760
    %1146 = vmatmul.mubr.f32.gmra.mxu0 %v1145
    %v1147 = vpop.f32.mrf.mxu0
    %v1148 = vadd.f32 %v917, %v1147
    %v1149 = vpop.f32.mrf.mxu0
    %1150 = vmatprep.mubr.f32.mxu0 0.0
    %v1151 = vand.u32 %v81, 4294901760
    %1152 = vmatmul.mubr.f32.gmra.mxu0 %v1151
    %v1153 = vpop.f32.mrf.mxu0
    %v1154 = vadd.f32 %v925, %v1153
    %v1155 = vpop.f32.mrf.mxu0
    %1156 = vmatprep.mubr.f32.mxu0 0.0
    %v1157 = vand.u32 %v82, 4294901760
    %1158 = vmatmul.mubr.f32.gmra.mxu0 %v1157
    %v1159 = vpop.f32.mrf.mxu0
    %v1160 = vadd.f32 %v933, %v1159
    %v1161 = vpop.f32.mrf.mxu0
    %1162 = vmatprep.mubr.f32.mxu0 0.0
    %v1163 = vand.u32 %v83, 4294901760
    %1164 = vmatmul.mubr.f32.gmra.mxu0 %v1163
    %v1165 = vpop.f32.mrf.mxu0
    %v1166 = vadd.f32 %v941, %v1165
    %v1167 = vpop.f32.mrf.mxu0
    %1168 = vmatprep.mubr.f32.mxu0 0.0
    %v1169 = vand.u32 %v84, 4294901760
    %1170 = vmatmul.mubr.f32.gmra.mxu0 %v1169
    %v1171 = vpop.f32.mrf.mxu0
    %v1172 = vadd.f32 %v949, %v1171
    %v1173 = vpop.f32.mrf.mxu0
    %1174 = vmatprep.mubr.f32.mxu0 0.0
    %v1175 = vand.u32 %v85, 4294901760
    %1176 = vmatmul.mubr.f32.gmra.mxu0 %v1175
    %v1177 = vpop.f32.mrf.mxu0
    %v1178 = vadd.f32 %v957, %v1177
    %v1179 = vpop.f32.mrf.mxu0
    %1180 = vmatprep.mubr.f32.mxu0 0.0
    %v1181 = vand.u32 %v86, 4294901760
    %1182 = vmatmul.mubr.f32.gmra.mxu0 %v1181
    %v1183 = vpop.f32.mrf.mxu0
    %v1184 = vadd.f32 %v965, %v1183
    %v1185 = vpop.f32.mrf.mxu0
    %1186 = vmatprep.mubr.f32.mxu0 0.0
    %v1187 = vand.u32 %v87, 4294901760
    %1188 = vmatmul.mubr.f32.gmra.mxu0 %v1187
    %v1189 = vpop.f32.mrf.mxu0
    %v1190 = vadd.f32 %v973, %v1189
    %v1191 = vpop.f32.mrf.mxu0
    %1192 = vmatprep.mubr.f32.mxu0 0.0
    %v1193 = vand.u32 %v88, 4294901760
    %1194 = vmatmul.mubr.f32.gmra.mxu0 %v1193
    %v1195 = vpop.f32.mrf.mxu0
    %v1196 = vadd.f32 %v981, %v1195
    %v1197 = vpop.f32.mrf.mxu0
    %1198 = vmatprep.mubr.f32.mxu0 0.0
    %v1199 = vand.u32 %v89, 4294901760
    %1200 = vmatmul.mubr.f32.gmra.mxu0 %v1199
    %v1201 = vpop.f32.mrf.mxu0
    %v1202 = vadd.f32 %v989, %v1201
    %v1203 = vpop.f32.mrf.mxu0
    %1204 = vmatprep.mubr.f32.mxu0 0.0
    %v1205 = vand.u32 %v90, 4294901760
    %1206 = vmatmul.mubr.f32.gmra.mxu0 %v1205
    %v1207 = vpop.f32.mrf.mxu0
    %v1208 = vadd.f32 %v997, %v1207
    %v1209 = vpop.f32.mrf.mxu0
    %1210 = vmatprep.mubr.f32.mxu0 0.0
    %v1211 = vand.u32 %v91, 4294901760
    %1212 = vmatmul.mubr.f32.gmra.mxu0 %v1211
    %v1213 = vpop.f32.mrf.mxu0
    %v1214 = vadd.f32 %v1005, %v1213
    %v1215 = vpop.f32.mrf.mxu0
    %1216 = vdwg.mxu0
    %1217 = vmatprep.subr.mxu0 0.0
    %v1218 = vand.u32 %v107, 4294901760
    %1219 = vmatpush1.xpose.msra.mxu0 %v1218
    %1220 = vmatprep.subr.mxu0 0.0
    %v1221 = vand.u32 %v106, 4294901760
    %1222 = vmatpush1.xpose.msra.mxu0 %v1221
    %1223 = vmatprep.subr.mxu0 0.0
    %v1224 = vand.u32 %v105, 4294901760
    %1225 = vmatpush1.xpose.msra.mxu0 %v1224
    %1226 = vmatprep.subr.mxu0 0.0
    %v1227 = vand.u32 %v104, 4294901760
    %1228 = vmatpush1.xpose.msra.mxu0 %v1227
    %1229 = vmatprep.subr.mxu0 0.0
    %v1230 = vand.u32 %v103, 4294901760
    %1231 = vmatpush1.xpose.msra.mxu0 %v1230
    %1232 = vmatprep.subr.mxu0 0.0
    %v1233 = vand.u32 %v102, 4294901760
    %1234 = vmatpush1.xpose.msra.mxu0 %v1233
    %1235 = vmatprep.subr.mxu0 0.0
    %v1236 = vand.u32 %v101, 4294901760
    %1237 = vmatpush1.xpose.msra.mxu0 %v1236
    %1238 = vmatprep.subr.mxu0 0.0
    %v1239 = vand.u32 %v100, 4294901760
    %1240 = vmatpush1.xpose.msra.mxu0 %v1239
    %1241 = vmatprep.subr.mxu0 0.0
    %v1242 = vand.u32 %v99, 4294901760
    %1243 = vmatpush1.xpose.msra.mxu0 %v1242
    %1244 = vmatprep.subr.mxu0 0.0
    %v1245 = vand.u32 %v98, 4294901760
    %1246 = vmatpush1.xpose.msra.mxu0 %v1245
    %1247 = vmatprep.subr.mxu0 0.0
    %v1248 = vand.u32 %v97, 4294901760
    %1249 = vmatpush1.xpose.msra.mxu0 %v1248
    %1250 = vmatprep.subr.mxu0 0.0
    %v1251 = vand.u32 %v96, 4294901760
    %1252 = vmatpush1.xpose.msra.mxu0 %v1251
    %1253 = vmatprep.subr.mxu0 0.0
    %v1254 = vand.u32 %v95, 4294901760
    %1255 = vmatpush1.xpose.msra.mxu0 %v1254
    %1256 = vmatprep.subr.mxu0 0.0
    %v1257 = vand.u32 %v94, 4294901760
    %1258 = vmatpush1.xpose.msra.mxu0 %v1257
    %1259 = vmatprep.subr.mxu0 0.0
    %v1260 = vand.u32 %v93, 4294901760
    %1261 = vmatpush1.xpose.msra.mxu0 %v1260
    %1262 = vmatprep.subr.mxu0 0.0
    %v1263 = vand.u32 %v92, 4294901760
    %1264 = vmatpush1.xpose.msra.mxu0 %v1263
    %1265 = vmatprep.subr.mxu0 0.0
    %1266 = vmatpush2.xpose.msra.mxu0 0.0
    %1267 = vmatprep.subr.mxu0 0.0
    %1268 = vmatpush2.xpose.msra.mxu0 0.0
    %1269 = vmatprep.subr.mxu0 0.0
    %1270 = vmatpush2.xpose.msra.mxu0 0.0
    %1271 = vmatprep.subr.mxu0 0.0
    %1272 = vmatpush2.xpose.msra.mxu0 0.0
    %1273 = vmatprep.subr.mxu0 0.0
    %1274 = vmatpush2.xpose.msra.mxu0 0.0
    %1275 = vmatprep.subr.mxu0 0.0
    %1276 = vmatpush2.xpose.msra.mxu0 0.0
    %1277 = vmatprep.subr.mxu0 0.0
    %1278 = vmatpush2.xpose.msra.mxu0 0.0
    %1279 = vmatprep.subr.mxu0 0.0
    %1280 = vmatpush2.xpose.msra.mxu0 0.0
    %1281 = vmatprep.subr.mxu0 0.0
    %1282 = vmatpush2.xpose.msra.mxu0 0.0
    %1283 = vmatprep.subr.mxu0 0.0
    %1284 = vmatpush2.xpose.msra.mxu0 0.0
    %1285 = vmatprep.subr.mxu0 0.0
    %1286 = vmatpush2.xpose.msra.mxu0 0.0
    %1287 = vmatprep.subr.mxu0 0.0
    %1288 = vmatpush2.xpose.msra.mxu0 0.0
    %1289 = vmatprep.subr.mxu0 0.0
    %1290 = vmatpush2.xpose.msra.mxu0 0.0
    %1291 = vmatprep.subr.mxu0 0.0
    %1292 = vmatpush2.xpose.msra.mxu0 0.0
    %1293 = vmatprep.subr.mxu0 0.0
    %1294 = vmatpush2.xpose.msra.mxu0 0.0
    %1295 = vmatprep.subr.mxu0 0.0
    %1296 = vmatpush2.xpose.msra.mxu0 0.0
    %1297 = vmatprep.mubr.f32.mxu0 0.0
    %v1298 = vand.u32 %v76, 4294901760
    %1299 = vmatmul.mubr.f32.gmra.mxu0 %v1298
    %v1300 = vpop.f32.mrf.mxu0
    %v1301 = vadd.f32 %v1124, %v1300
    %v1302 = vpop.f32.mrf.mxu0
    %1303 = vmatprep.mubr.f32.mxu0 0.0
    %v1304 = vand.u32 %v77, 4294901760
    %1305 = vmatmul.mubr.f32.gmra.mxu0 %v1304
    %v1306 = vpop.f32.mrf.mxu0
    %v1307 = vadd.f32 %v1130, %v1306
    %v1308 = vpop.f32.mrf.mxu0
    %1309 = vmatprep.mubr.f32.mxu0 0.0
    %v1310 = vand.u32 %v78, 4294901760
    %1311 = vmatmul.mubr.f32.gmra.mxu0 %v1310
    %v1312 = vpop.f32.mrf.mxu0
    %v1313 = vadd.f32 %v1136, %v1312
    %v1314 = vpop.f32.mrf.mxu0
    %1315 = vmatprep.mubr.f32.mxu0 0.0
    %v1316 = vand.u32 %v79, 4294901760
    %1317 = vmatmul.mubr.f32.gmra.mxu0 %v1316
    %v1318 = vpop.f32.mrf.mxu0
    %v1319 = vadd.f32 %v1142, %v1318
    %v1320 = vpop.f32.mrf.mxu0
    %1321 = vmatprep.mubr.f32.mxu0 0.0
    %v1322 = vand.u32 %v80, 4294901760
    %1323 = vmatmul.mubr.f32.gmra.mxu0 %v1322
    %v1324 = vpop.f32.mrf.mxu0
    %v1325 = vadd.f32 %v1148, %v1324
    %v1326 = vpop.f32.mrf.mxu0
    %1327 = vmatprep.mubr.f32.mxu0 0.0
    %v1328 = vand.u32 %v81, 4294901760
    %1329 = vmatmul.mubr.f32.gmra.mxu0 %v1328
    %v1330 = vpop.f32.mrf.mxu0
    %v1331 = vadd.f32 %v1154, %v1330
    %v1332 = vpop.f32.mrf.mxu0
    %1333 = vmatprep.mubr.f32.mxu0 0.0
    %v1334 = vand.u32 %v82, 4294901760
    %1335 = vmatmul.mubr.f32.gmra.mxu0 %v1334
    %v1336 = vpop.f32.mrf.mxu0
    %v1337 = vadd.f32 %v1160, %v1336
    %v1338 = vpop.f32.mrf.mxu0
    %1339 = vmatprep.mubr.f32.mxu0 0.0
    %v1340 = vand.u32 %v83, 4294901760
    %1341 = vmatmul.mubr.f32.gmra.mxu0 %v1340
    %v1342 = vpop.f32.mrf.mxu0
    %v1343 = vadd.f32 %v1166, %v1342
    %v1344 = vpop.f32.mrf.mxu0
    %1345 = vmatprep.mubr.f32.mxu0 0.0
    %v1346 = vand.u32 %v84, 4294901760
    %1347 = vmatmul.mubr.f32.gmra.mxu0 %v1346
    %v1348 = vpop.f32.mrf.mxu0
    %v1349 = vadd.f32 %v1172, %v1348
    %v1350 = vpop.f32.mrf.mxu0
    %1351 = vmatprep.mubr.f32.mxu0 0.0
    %v1352 = vand.u32 %v85, 4294901760
    %1353 = vmatmul.mubr.f32.gmra.mxu0 %v1352
    %v1354 = vpop.f32.mrf.mxu0
    %v1355 = vadd.f32 %v1178, %v1354
    %v1356 = vpop.f32.mrf.mxu0
    %1357 = vmatprep.mubr.f32.mxu0 0.0
    %v1358 = vand.u32 %v86, 4294901760
    %1359 = vmatmul.mubr.f32.gmra.mxu0 %v1358
    %v1360 = vpop.f32.mrf.mxu0
    %v1361 = vadd.f32 %v1184, %v1360
    %v1362 = vpop.f32.mrf.mxu0
    %1363 = vmatprep.mubr.f32.mxu0 0.0
    %v1364 = vand.u32 %v87, 4294901760
    %1365 = vmatmul.mubr.f32.gmra.mxu0 %v1364
    %v1366 = vpop.f32.mrf.mxu0
    %v1367 = vadd.f32 %v1190, %v1366
    %v1368 = vpop.f32.mrf.mxu0
    %1369 = vmatprep.mubr.f32.mxu0 0.0
    %v1370 = vand.u32 %v88, 4294901760
    %1371 = vmatmul.mubr.f32.gmra.mxu0 %v1370
    %v1372 = vpop.f32.mrf.mxu0
    %v1373 = vadd.f32 %v1196, %v1372
    %v1374 = vpop.f32.mrf.mxu0
    %1375 = vmatprep.mubr.f32.mxu0 0.0
    %v1376 = vand.u32 %v89, 4294901760
    %1377 = vmatmul.mubr.f32.gmra.mxu0 %v1376
    %v1378 = vpop.f32.mrf.mxu0
    %v1379 = vadd.f32 %v1202, %v1378
    %v1380 = vpop.f32.mrf.mxu0
    %1381 = vmatprep.mubr.f32.mxu0 0.0
    %v1382 = vand.u32 %v90, 4294901760
    %1383 = vmatmul.mubr.f32.gmra.mxu0 %v1382
    %v1384 = vpop.f32.mrf.mxu0
    %v1385 = vadd.f32 %v1208, %v1384
    %v1386 = vpop.f32.mrf.mxu0
    %1387 = vmatprep.mubr.f32.mxu0 0.0
    %v1388 = vand.u32 %v91, 4294901760
    %1389 = vmatmul.mubr.f32.gmra.mxu0 %v1388
    %v1390 = vpop.f32.mrf.mxu0
    %v1391 = vadd.f32 %v1214, %v1390
    %v1392 = vpop.f32.mrf.mxu0
    %1393 = vdwg.mxu0
    %v1394 = vadd.f32 %v60, %v1301
    %v1395 = vadd.f32 %v61, %v1307
    %v1396 = vadd.f32 %v62, %v1313
    %v1397 = vadd.f32 %v63, %v1319
    %v1398 = vadd.f32 %v64, %v1325
    %v1399 = vadd.f32 %v65, %v1331
    %v1400 = vadd.f32 %v66, %v1337
    %v1401 = vadd.f32 %v67, %v1343
    %v1402 = vadd.f32 %v68, %v1349
    %v1403 = vadd.f32 %v69, %v1355
    %v1404 = vadd.f32 %v70, %v1361
    %v1405 = vadd.f32 %v71, %v1367
    %v1406 = vadd.f32 %v72, %v1373
    %v1407 = vadd.f32 %v73, %v1379
    %v1408 = vadd.f32 %v74, %v1385
    %v1409 = vadd.f32 %v75, %v1391
    %1410 = vst [vmem:[#allocation7] sm:$0xff] %v1394
    %1411 = vst [vmem:[#allocation7 + $0x8] sm:$0xff] %v1395
    %1412 = vst [vmem:[#allocation7 + $0x10] sm:$0xff] %v1396
    %1413 = vst [vmem:[#allocation7 + $0x18] sm:$0xff] %v1397
    %1414 = vst [vmem:[#allocation7 + $0x20] sm:$0xff] %v1398
    %1415 = vst [vmem:[#allocation7 + $0x28] sm:$0xff] %v1399
    %1416 = vst [vmem:[#allocation7 + $0x30] sm:$0xff] %v1400
    %1417 = vst [vmem:[#allocation7 + $0x38] sm:$0xff] %v1401
    %1418 = vst [vmem:[#allocation7 + $0x40] sm:$0xff] %v1402
    %1419 = vst [vmem:[#allocation7 + $0x48] sm:$0xff] %v1403
    %1420 = vst [vmem:[#allocation7 + $0x50] sm:$0xff] %v1404
    %1421 = vst [vmem:[#allocation7 + $0x58] sm:$0xff] %v1405
    %1422 = vst [vmem:[#allocation7 + $0x60] sm:$0xff] %v1406
    %1423 = vst [vmem:[#allocation7 + $0x68] sm:$0xff] %v1407
    %1424 = vst [vmem:[#allocation7 + $0x70] sm:$0xff] %v1408
    %1425 = vst [vmem:[#allocation7 + $0x78] sm:$0xff] %v1409
    // Predicated region
    $region22: #{tpu_custom_call.1} parent=1 // pred_check
      %p1426 = pneg %p40
    $region23: #{tpu_custom_call.1} parent=1 // pred_check_branch
      %1428 = sbr.rel (%p1426) target = $region25
    $region24: #{tpu_custom_call.1} parent=1 // pred_region
      %v1429 = vld [vmem:[#allocation7] sm:$0xff]
      %v1430 = vld [vmem:[#allocation7 + $0x8] sm:$0xff]
      %v1431 = vld [vmem:[#allocation7 + $0x10] sm:$0xff]
      %v1432 = vld [vmem:[#allocation7 + $0x18] sm:$0xff]
      %v1433 = vld [vmem:[#allocation7 + $0x20] sm:$0xff]
      %v1434 = vld [vmem:[#allocation7 + $0x28] sm:$0xff]
      %v1435 = vld [vmem:[#allocation7 + $0x30] sm:$0xff]
      %v1436 = vld [vmem:[#allocation7 + $0x38] sm:$0xff]
      %v1437 = vld [vmem:[#allocation7 + $0x40] sm:$0xff]
      %v1438 = vld [vmem:[#allocation7 + $0x48] sm:$0xff]
      %v1439 = vld [vmem:[#allocation7 + $0x50] sm:$0xff]
      %v1440 = vld [vmem:[#allocation7 + $0x58] sm:$0xff]
      %v1441 = vld [vmem:[#allocation7 + $0x60] sm:$0xff]
      %v1442 = vld [vmem:[#allocation7 + $0x68] sm:$0xff]
      %v1443 = vld [vmem:[#allocation7 + $0x70] sm:$0xff]
      %v1444 = vld [vmem:[#allocation7 + $0x78] sm:$0xff]
      %v1445 = vmul.f32 %v1429, 0.00048828125
      %v1446 = vmul.f32 %v1430, 0.00048828125
      %v1447 = vmul.f32 %v1431, 0.00048828125
      %v1448 = vmul.f32 %v1432, 0.00048828125
      %v1449 = vmul.f32 %v1433, 0.00048828125
      %v1450 = vmul.f32 %v1434, 0.00048828125
      %v1451 = vmul.f32 %v1435, 0.00048828125
      %v1452 = vmul.f32 %v1436, 0.00048828125
      %v1453 = vmul.f32 %v1437, 0.00048828125
      %v1454 = vmul.f32 %v1438, 0.00048828125
      %v1455 = vmul.f32 %v1439, 0.00048828125
      %v1456 = vmul.f32 %v1440, 0.00048828125
      %v1457 = vmul.f32 %v1441, 0.00048828125
      %v1458 = vmul.f32 %v1442, 0.00048828125
      %v1459 = vmul.f32 %v1443, 0.00048828125
      %v1460 = vmul.f32 %v1444, 0.00048828125
      %1461 = vst [vmem:[#allocation7] sm:$0xff] %v1445
      %1462 = vst [vmem:[#allocation7 + $0x8] sm:$0xff] %v1446
      %1463 = vst [vmem:[#allocation7 + $0x10] sm:$0xff] %v1447
      %1464 = vst [vmem:[#allocation7 + $0x18] sm:$0xff] %v1448
      %1465 = vst [vmem:[#allocation7 + $0x20] sm:$0xff] %v1449
      %1466 = vst [vmem:[#allocation7 + $0x28] sm:$0xff] %v1450
      %1467 = vst [vmem:[#allocation7 + $0x30] sm:$0xff] %v1451
      %1468 = vst [vmem:[#allocation7 + $0x38] sm:$0xff] %v1452
      %1469 = vst [vmem:[#allocation7 + $0x40] sm:$0xff] %v1453
      %1470 = vst [vmem:[#allocation7 + $0x48] sm:$0xff] %v1454
      %1471 = vst [vmem:[#allocation7 + $0x50] sm:$0xff] %v1455
      %1472 = vst [vmem:[#allocation7 + $0x58] sm:$0xff] %v1456
      %1473 = vst [vmem:[#allocation7 + $0x60] sm:$0xff] %v1457
      %1474 = vst [vmem:[#allocation7 + $0x68] sm:$0xff] %v1458
      %1475 = vst [vmem:[#allocation7 + $0x70] sm:$0xff] %v1459
      %1476 = vst [vmem:[#allocation7 + $0x78] sm:$0xff] %v1460
    $region25: #{tpu_custom_call.1} parent=1 // pred_fallthru
      _
    // Predicated region
    $region26: #{tpu_custom_call.1} parent=1 // pred_check
      _
    $region27: #{tpu_custom_call.1} parent=1 // pred_check_branch
      %1478 = sbr.rel (0) target = $region29
    $region28: #{tpu_custom_call.1} parent=1 // pred_region
      %s1480 = ssub.s32 2048, 2048
      %1481 = vsyncadd [#allocation4], %s1480
      %s1482 = sshll.u32 [#allocation7], 4
      %s1483 = int_to_ptr.vmem [resolvable:$true] %s1482
      %1488 = dma.vmem_to_hbm [thread:$0]  %s1483, 2048, %s2, [#allocation4], 128, 128, 8
    $region29: #{tpu_custom_call.1} parent=1 // pred_fallthru
      _
    // Predicated region
    $region30: #{tpu_custom_call.1} parent=1 // pred_check
      _
    $region31: #{tpu_custom_call.1} parent=1 // pred_check_branch
      %1490 = sbr.rel (0) target = $region33
    $region32: #{tpu_custom_call.1} parent=1 // pred_region
      %1491 = dma.done [#allocation4], 2048
    $region33: #{tpu_custom_call.1} parent=1 // pred_fallthru
      _
    %1492 = vsyncpa [#allocation3], 1
    %1493 = vsyncpa [#allocation6], 1
    %1494 = vsyncpa [#allocation4], 1

</llo_original>
